<compile_context>
chip_gen: v5e
topology: v5e:2x2
jax: 0.10.0
libtpu: 0.0.40
codegen_flags: <defaults>
</compile_context>

<pallas_src>
import jax
import jax.numpy as jnp
from jax.experimental import pallas as pl
from jax.experimental.pallas import tpu as pltpu


def _round_up(x, m):
    return ((x + m - 1) // m) * m


# ----------------------------------------------------------------------------
# Pallas kernel: one decoder step, grid over vocab tiles
# ----------------------------------------------------------------------------
def decoder_step_kernel(
    # activations (padded)
    emb_ref, h0_ref, c0_ref, ctx_ref,
    # fused LSTM weights (bf16) + bias (f32)
    wx_ref, wh_ref, bg_ref,            # (E_pad,4H_pad), (H_pad,4H_pad), (1,4H_pad)
    # FF1 (bf16 weights, f32 bias)
    w1h_ref, w1c_ref, b1_ref,          # (H_pad,H_pad), (C_pad,H_pad), (1,H_pad)
    # vocab projection: pre-tiled bf16 slabs + full resident bias
    w2_ref, b2_ref,                    # (1,H_pad,TILE_V) bf16, (1,V_pad) f32
    # pointer-gen row vectors (f32, evaluated on the VPU)
    wg_ctx_ref, wg_h_ref, wg_c_ref, wg_emb_ref, bgen_ref,
    # outputs
    p_vocab_ref, h_out_ref, c_out_ref, p_gen_ref,
    # scratch (persists across the vocab grid)
    ff1_sc, h_sc, c_sc, pg_sc, mmax_sc, logits_sc,
):
    j = pl.program_id(0)
    n_tiles = pl.num_programs(0)
    tile_v = w2_ref.shape[2]
    h_pad = h0_ref.shape[1]

    # ---- prologue (first tile only): LSTM cell, FF1, p_gen -> scratch -------
    @pl.when(j == 0)
    def _prologue():
        x = emb_ref[...]            # (B, E_pad) f32
        h = h0_ref[...]             # (B, H_pad) f32
        c = c0_ref[...]             # (B, H_pad) f32
        ctx = ctx_ref[...]          # (B, C_pad) f32

        gates = (
            jnp.dot(x.astype(jnp.bfloat16), wx_ref[...],
                    preferred_element_type=jnp.float32)
            + jnp.dot(h.astype(jnp.bfloat16), wh_ref[...],
                      preferred_element_type=jnp.float32)
            + bg_ref[...]
        )                            # (B, 4*H_pad), PyTorch gate order i,f,g,o
        i_g = jax.nn.sigmoid(gates[:, 0 * h_pad:1 * h_pad])
        f_g = jax.nn.sigmoid(gates[:, 1 * h_pad:2 * h_pad])
        g_g = jnp.tanh(gates[:, 2 * h_pad:3 * h_pad])
        o_g = jax.nn.sigmoid(gates[:, 3 * h_pad:4 * h_pad])

        c_new = f_g * c + i_g * g_g
        h_new = o_g * jnp.tanh(c_new)
        h_sc[...] = h_new
        c_sc[...] = c_new

        # FF1 without concatenating [h_new, ctx]
        ff1 = (
            jnp.dot(h_new.astype(jnp.bfloat16), w1h_ref[...],
                    preferred_element_type=jnp.float32)
            + jnp.dot(ctx.astype(jnp.bfloat16), w1c_ref[...],
                      preferred_element_type=jnp.float32)
            + b1_ref[...]
        )
        ff1_sc[...] = ff1

        # p_gen on the VPU: per-segment broadcast-mul + lane reduce
        pg_logit = (
            jnp.sum(ctx * wg_ctx_ref[...], axis=-1, keepdims=True)
            + jnp.sum(h_new * wg_h_ref[...], axis=-1, keepdims=True)
            + jnp.sum(c_new * wg_c_ref[...], axis=-1, keepdims=True)
            + jnp.sum(x * wg_emb_ref[...], axis=-1, keepdims=True)
            + bgen_ref[...]
        )
        pg_sc[...] = jax.nn.sigmoid(pg_logit)

        mmax_sc[...] = jnp.full(mmax_sc.shape, -jnp.inf, mmax_sc.dtype)

    # ---- every step: one vocab tile of logits + running row-max -------------
    col = pl.multiple_of(j * tile_v, tile_v)
    logits = (
        jnp.dot(ff1_sc[...].astype(jnp.bfloat16), w2_ref[0],
                preferred_element_type=jnp.float32)
        + b2_ref[:, pl.ds(col, tile_v)]
    )                                                  # (B, TILE_V) f32
    logits_sc[:, pl.ds(col, tile_v)] = logits
    mmax_sc[...] = jnp.maximum(mmax_sc[...],
                               jnp.max(logits, axis=-1, keepdims=True))

    # ---- epilogue (last tile): single-pass softmax, write ALL outputs once --
    @pl.when(j == n_tiles - 1)
    def _epilogue():
        z = logits_sc[...]                              # (B, V_pad) f32
        e = jnp.exp(z - mmax_sc[...])
        s = jnp.sum(e, axis=-1, keepdims=True)
        p_vocab_ref[...] = e * (1.0 / s)                # exact reciprocal
        h_out_ref[...] = h_sc[...]
        c_out_ref[...] = c_sc[...]
        p_gen_ref[...] = pg_sc[...]


# ----------------------------------------------------------------------------
# Parameter init (PyTorch layout) and conversion to kernel layout
# ----------------------------------------------------------------------------
def init_decoder_params(key, vocab_size, embed_size, hidden_size):
    """Parameters in the same layout/conventions as the PyTorch module."""
    V, E, H = vocab_size, embed_size, hidden_size
    ks = jax.random.split(key, 11)
    s = 0.1
    rnd = lambda k, shape: (s * jax.random.normal(k, shape)).astype(jnp.float32)
    return {
        "embedding": rnd(ks[0], (V, E)),
        "w_ih": rnd(ks[1], (4 * H, E)),     # nn.LSTM weight_ih_l0
        "w_hh": rnd(ks[2], (4 * H, H)),     # nn.LSTM weight_hh_l0
        "b_ih": rnd(ks[3], (4 * H,)),
        "b_hh": rnd(ks[4], (4 * H,)),
        "w1": rnd(ks[5], (H, 3 * H)),       # nn.Linear(3H, H)
        "b1": rnd(ks[6], (H,)),
        "w2": rnd(ks[7], (V, H)),           # nn.Linear(H, V)
        "b2": rnd(ks[8], (V,)),
        "w_gen": rnd(ks[9], (1, 4 * H + E)),
        "b_gen": rnd(ks[10], (1,)),
    }


def prepare_kernel_params(p, tile_v=2048):
    """Fuse / transpose / pad / pre-tile PyTorch-layout params for the kernel."""
    V, E = p["embedding"].shape
    H = p["w_hh"].shape[1]
    Hp = _round_up(H, 128)
    Ep = _round_up(E, 128)
    Cp = _round_up(2 * H, 128)                   # padded context width

    # vocab tile: multiple of 128, <= padded vocab, and keep one bf16 W2 slab
    # under ~4 MiB so the double-buffered stream fits comfortably (v7x VMEM).
    tile_v = max(128, (tile_v // 128) * 128)
    tile_v = min(tile_v, _round_up(V, 128))
    max_tile = max(128, (((4 << 20) // (2 * Hp)) // 128) * 128)
    tile_v = min(tile_v, max_tile)
    Vp = _round_up(V, tile_v)
    n_tiles = Vp // tile_v

    def pad2(a, r, c):
        return jnp.pad(a, ((0, r - a.shape[0]), (0, c - a.shape[1])))

    emb_tbl = pad2(p["embedding"], V, Ep)        # pad feature dim only

    # fused LSTM gate weights: (in_pad, 4*Hp) bf16, gate g in cols [g*Hp, g*Hp+H)
    def fuse_gates(w, in_dim, in_pad):           # w: (4H, in_dim) torch layout
        out = jnp.zeros((in_pad, 4 * Hp), jnp.float32)
        for g in range(4):
            out = out.at[:in_dim, g * Hp:g * Hp + H].set(w[g * H:(g + 1) * H, :].T)
        return out.astype(jnp.bfloat16)

    w_x = fuse_gates(p["w_ih"], E, Ep)
    w_h = fuse_gates(p["w_hh"], H, Hp)
    b_lstm = p["b_ih"] + p["b_hh"]
    b_g = jnp.zeros((1, 4 * Hp), jnp.float32)
    for g in range(4):
        b_g = b_g.at[0, g * Hp:g * Hp + H].set(b_lstm[g * H:(g + 1) * H])

    # W1 split over its concatenated input [h (H), ctx (2H)], bf16
    w1 = p["w1"]
    w1_h = pad2(w1[:, :H].T, Hp, Hp).astype(jnp.bfloat16)
    w1_ctx = pad2(w1[:, H:].T, Cp, Hp).astype(jnp.bfloat16)
    b1 = pad2(p["b1"][None, :], 1, Hp)

    # W2 -> pre-tiled contiguous slabs (n_tiles, Hp, tile_v) bf16
    w2_full = pad2(p["w2"].T, Hp, Vp).astype(jnp.bfloat16)
    w2t = w2_full.reshape(Hp, n_tiles, tile_v).transpose(1, 0, 2)
    # full bias stays VMEM-resident; padded vocab columns get a huge negative bias
    b2 = jnp.full((1, Vp), -1e9, jnp.float32).at[0, :V].set(p["b2"])

    # w_gen split over its concatenated input [ctx (2H), h (H), c (H), emb (E)]
    wg = p["w_gen"][0]
    wg_ctx = pad2(wg[: 2 * H][None, :], 1, Cp)
    wg_h = pad2(wg[2 * H:3 * H][None, :], 1, Hp)
    wg_c = pad2(wg[3 * H:4 * H][None, :], 1, Hp)
    wg_emb = pad2(wg[4 * H:][None, :], 1, Ep)
    b_gen = p["b_gen"].reshape(1, 1)

    kparams = {
        "emb_tbl": emb_tbl, "w_x": w_x, "w_h": w_h, "b_g": b_g,
        "w1_h": w1_h, "w1_ctx": w1_ctx, "b1": b1,
        "w2t": w2t, "b2": b2,
        "wg_ctx": wg_ctx, "wg_h": wg_h, "wg_c": wg_c, "wg_emb": wg_emb,
        "b_gen": b_gen,
    }
    dims = dict(V=V, E=E, H=H, Vp=Vp, Ep=Ep, Hp=Hp, Cp=Cp,
                tile_v=tile_v, n_tiles=n_tiles)
    return kparams, dims


# ----------------------------------------------------------------------------
# Forward wrappers
# ----------------------------------------------------------------------------
def decoder_forward_padded(kp, dims, emb_p, h_p, c_p, ctx_p):
    """Decode-loop fast path: activations already in padded kernel layout.

    emb_p: (Bp, Ep), h_p / c_p: (Bp, Hp), ctx_p: (Bp, Cp).
    Returns padded (p_vocab (Bp, Vp), h_new (Bp, Hp), c_new (Bp, Hp),
    p_gen (Bp, 1)).  h_p/c_p are aliased to the state outputs so a donated
    decode loop updates the recurrent state in place (no per-step glue).
    """
    Hp, Cp, Ep = dims["Hp"], dims["Cp"], dims["Ep"]
    Vp, tile_v, n_tiles = dims["Vp"], dims["tile_v"], dims["n_tiles"]
    Bp = emb_p.shape[0]

    def const(shape):
        return pl.BlockSpec(shape, lambda j: (0,) * len(shape))

    in_specs = [
        const((Bp, Ep)), const((Bp, Hp)), const((Bp, Hp)), const((Bp, Cp)),
        const((Ep, 4 * Hp)), const((Hp, 4 * Hp)), const((1, 4 * Hp)),
        const((Hp, Hp)), const((Cp, Hp)), const((1, Hp)),
        pl.BlockSpec((1, Hp, tile_v), lambda j: (j, 0, 0)),   # W2 slab stream
        const((1, Vp)),                                        # b2 resident
        const((1, Cp)), const((1, Hp)), const((1, Hp)), const((1, Ep)),
        const((1, 1)),
    ]
    out_specs = (
        const((Bp, Vp)),        # p_vocab
        const((Bp, Hp)),        # h_new
        const((Bp, Hp)),        # c_new
        const((Bp, 1)),         # p_gen
    )
    out_shape = (
        jax.ShapeDtypeStruct((Bp, Vp), jnp.float32),
        jax.ShapeDtypeStruct((Bp, Hp), jnp.float32),
        jax.ShapeDtypeStruct((Bp, Hp), jnp.float32),
        jax.ShapeDtypeStruct((Bp, 1), jnp.float32),
    )
    scratch_shapes = [
        pltpu.VMEM((Bp, Hp), jnp.float32),   # ff1
        pltpu.VMEM((Bp, Hp), jnp.float32),   # h_new
        pltpu.VMEM((Bp, Hp), jnp.float32),   # c_new
        pltpu.VMEM((Bp, 1), jnp.float32),    # p_gen
        pltpu.VMEM((Bp, 1), jnp.float32),    # running max
        pltpu.VMEM((Bp, Vp), jnp.float32),   # logits (resident across grid)
    ]

    inputs = (
        emb_p, h_p, c_p, ctx_p,
        kp["w_x"], kp["w_h"], kp["b_g"],
        kp["w1_h"], kp["w1_ctx"], kp["b1"],
        kp["w2t"], kp["b2"],
        kp["wg_ctx"], kp["wg_h"], kp["wg_c"], kp["wg_emb"], kp["b_gen"],
    )

    # ---- VMEM budget (generation-aware, with Mosaic headroom) ---------------
    def nbytes(a):
        return a.size * a.dtype.itemsize

    resident = sum(nbytes(a) for a in inputs) - nbytes(kp["w2t"])
    streamed = 2 * (Hp * tile_v * 2)                     # double-buffered bf16 slab
    out_bytes = (Bp * Vp + 2 * Bp * Hp + Bp) * 4
    scratch_bytes = (3 * Bp * Hp + 2 * Bp + Bp * Vp) * 4
    est = resident + streamed + out_bytes + scratch_bytes
    try:
        vmem_phys = int(pltpu.get_tpu_info().vmem_capacity_bytes)
    except Exception:
        vmem_phys = 64 << 20                             # v7x-safe fallback
    vmem_cap = (3 * vmem_phys) // 4                      # headroom for Mosaic
    vmem_limit = int(min(max(2 * est + (4 << 20), 32 << 20), vmem_cap))

    flops = (2 * Bp * (Ep + Hp) * 4 * Hp + 2 * Bp * (Hp + Cp) * Hp
             + 2 * Bp * Hp * Vp)
    cost = pl.CostEstimate(
        flops=flops,
        transcendentals=Bp * (5 * Hp + Vp + 1),
        bytes_accessed=sum(nbytes(a) for a in inputs) + out_bytes,
    )

    return pl.pallas_call(
        decoder_step_kernel,
        grid=(n_tiles,),
        in_specs=in_specs,
        out_specs=out_specs,
        out_shape=out_shape,
        scratch_shapes=scratch_shapes,
        input_output_aliases={1: 1, 2: 2},   # h0 -> h_new, c0 -> c_new
        compiler_params=pltpu.CompilerParams(
            dimension_semantics=("arbitrary",),
            vmem_limit_bytes=vmem_limit,
        ),
        cost_estimate=cost,
    )(*inputs)


def decoder_forward(kp, dims, x_t, decoder_states, context_vector):
    """
    Module-interface wrapper (matches the PyTorch forward).
    Args:
      x_t:             (B, 1) int32 token ids.
      decoder_states:  (h, c), each (1, B, H) float32.
      context_vector:  (B, 2H) float32.
    Returns:
      p_vocab (B, V), (h_new, c_new) each (1, B, H), p_gen (B, 1).
    """
    V, H = dims["V"], dims["H"]
    Hp, Cp = dims["Hp"], dims["Cp"]
    h0, c0 = decoder_states
    B = x_t.shape[0]
    Bp = _round_up(max(B, 8), 8)

    emb = jnp.take(kp["emb_tbl"], x_t[:, 0], axis=0)           # (B, Ep)
    emb_p = jnp.pad(emb, ((0, Bp - B), (0, 0)))
    h_p = jnp.pad(h0[0], ((0, Bp - B), (0, Hp - H)))
    c_p = jnp.pad(c0[0], ((0, Bp - B), (0, Hp - H)))
    ctx_p = jnp.pad(context_vector, ((0, Bp - B), (0, Cp - 2 * H)))

    p_vocab_p, h_new_p, c_new_p, p_gen_p = decoder_forward_padded(
        kp, dims, emb_p, h_p, c_p, ctx_p)

    p_vocab = p_vocab_p[:B, :V]
    h_new = h_new_p[:B, :H][None, :, :]
    c_new = c_new_p[:B, :H][None, :, :]
    p_gen = p_gen_p[:B]
    return p_vocab, (h_new, c_new), p_gen


# ----------------------------------------------------------------------------
# Pure-JAX reference (mirrors the PyTorch forward, f32 end-to-end)
# ----------------------------------------------------------------------------
def reference_forward(p, x_t, decoder_states, ctx):
    h0, c0 = decoder_states
    H = h0.shape[-1]
    emb = p["embedding"][x_t[:, 0]]
    gates = emb @ p["w_ih"].T + h0[0] @ p["w_hh"].T + (p["b_ih"] + p["b_hh"])
    i_g = jax.nn.sigmoid(gates[:, :H])
    f_g = jax.nn.sigmoid(gates[:, H:2 * H])
    g_g = jnp.tanh(gates[:, 2 * H:3 * H])
    o_g = jax.nn.sigmoid(gates[:, 3 * H:])
    c_new = f_g * c0[0] + i_g * g_g
    h_new = o_g * jnp.tanh(c_new)
    concat = jnp.concatenate([h_new, ctx], axis=-1)
    ff1 = concat @ p["w1"].T + p["b1"]
    ff2 = ff1 @ p["w2"].T + p["b2"]
    p_vocab = jax.nn.softmax(ff2, axis=-1)
    x_gen = jnp.concatenate([ctx, h_new, c_new, emb], axis=-1)
    p_gen = jax.nn.sigmoid(x_gen @ p["w_gen"].T + p["b_gen"])
    return p_vocab, (h_new[None], c_new[None]), p_gen


# ----------------------------------------------------------------------------
# Demo
# ----------------------------------------------------------------------------
if __name__ == "__main__":
    VOCAB, EMBED, HIDDEN, BATCH = 1000, 16, 32, 4

    key = jax.random.PRNGKey(0)
    k_params, k_x, k_h, k_c, k_ctx = jax.random.split(key, 5)

    params = init_decoder_params(k_params, VOCAB, EMBED, HIDDEN)
    # tile_v=256 here only so that this small demo vocab exercises the
    # multi-tile W2 stream / running-max path; the production default is 2048.
    kparams, dims = prepare_kernel_params(params, tile_v=256)

    x_t = jax.random.randint(k_x, (BATCH, 1), 0, VOCAB, dtype=jnp.int32)
    h0 = jax.random.normal(k_h, (1, BATCH, HIDDEN), dtype=jnp.float32)
    c0 = jax.random.normal(k_c, (1, BATCH, HIDDEN), dtype=jnp.float32)
    ctx = jax.random.normal(k_ctx, (BATCH, 2 * HIDDEN), dtype=jnp.float32)

    @jax.jit
    def fwd(kp, x, states, context):
        return decoder_forward(kp, dims, x, states, context)

    p_vocab, (h_new, c_new), p_gen = fwd(kparams, x_t, (h0, c0), ctx)
    jax.block_until_ready((p_vocab, h_new, c_new, p_gen))

    # reference check (f32 end-to-end)
    p_vocab_r, (h_r, c_r), p_gen_r = reference_forward(params, x_t, (h0, c0), ctx)

    assert p_vocab.shape == (BATCH, VOCAB)
    assert h_new.shape == (1, BATCH, HIDDEN) and c_new.shape == (1, BATCH, HIDDEN)
    assert p_gen.shape == (BATCH, 1)
    # softmax rows sum to 1 (exact division in the kernel)
    assert bool(jnp.allclose(jnp.sum(p_vocab, axis=-1), 1.0, atol=1e-3))
    # p_gen is a probability
    assert bool(jnp.all((p_gen >= 0.0) & (p_gen <= 1.0)))
    # match the pure-JAX reference (bf16 weights -> modest tolerances)
    assert bool(jnp.allclose(p_vocab, p_vocab_r, atol=2e-3))
    assert bool(jnp.allclose(h_new, h_r, atol=1e-2))
    assert bool(jnp.allclose(c_new, c_r, atol=1e-2))
    assert bool(jnp.allclose(p_gen, p_gen_r, atol=5e-3))

    print("KERNEL_OK")
</pallas_src>

<mosaic_0001>
module attributes {stable_mosaic.version = 11 : i64} {
  func.func @decoder_step_kernel(%arg0: i32, %arg1: memref<8x128xf32, #tpu.memory_space<vmem>>, %arg2: memref<8x128xf32, #tpu.memory_space<vmem>>, %arg3: memref<8x128xf32, #tpu.memory_space<vmem>>, %arg4: memref<8x128xf32, #tpu.memory_space<vmem>>, %arg5: memref<128x512xbf16, #tpu.memory_space<vmem>>, %arg6: memref<128x512xbf16, #tpu.memory_space<vmem>>, %arg7: memref<1x512xf32, #tpu.memory_space<vmem>>, %arg8: memref<128x128xbf16, #tpu.memory_space<vmem>>, %arg9: memref<128x128xbf16, #tpu.memory_space<vmem>>, %arg10: memref<1x128xf32, #tpu.memory_space<vmem>>, %arg11: memref<1x128x256xbf16, #tpu.memory_space<vmem>>, %arg12: memref<1x1024xf32, #tpu.memory_space<vmem>>, %arg13: memref<1x128xf32, #tpu.memory_space<vmem>>, %arg14: memref<1x128xf32, #tpu.memory_space<vmem>>, %arg15: memref<1x128xf32, #tpu.memory_space<vmem>>, %arg16: memref<1x128xf32, #tpu.memory_space<vmem>>, %arg17: memref<1x1xf32, #tpu.memory_space<vmem>>, %arg18: memref<8x1024xf32, #tpu.memory_space<vmem>>, %arg19: memref<8x128xf32, #tpu.memory_space<vmem>>, %arg20: memref<8x128xf32, #tpu.memory_space<vmem>>, %arg21: memref<8x1xf32, #tpu.memory_space<vmem>>, %arg22: memref<8x128xf32, #tpu.memory_space<vmem>>, %arg23: memref<8x128xf32, #tpu.memory_space<vmem>>, %arg24: memref<8x128xf32, #tpu.memory_space<vmem>>, %arg25: memref<8x1xf32, #tpu.memory_space<vmem>>, %arg26: memref<8x1xf32, #tpu.memory_space<vmem>>, %arg27: memref<8x1024xf32, #tpu.memory_space<vmem>>) attributes {dimension_semantics = [#tpu.dimension_semantics<arbitrary>], iteration_bounds = array<i64: 4>, scalar_prefetch = 0 : i64, scratch_operands = 6 : i64, tpu.core_type = #tpu.core_type<tc>, window_params = [{pipeline_mode = #tpu.pipeline_mode<synchronous>, transform_indices = @transform_0, window_bounds = array<i64: 8, 128>}, {pipeline_mode = #tpu.pipeline_mode<synchronous>, transform_indices = @transform_1, window_bounds = array<i64: 8, 128>}, {pipeline_mode = #tpu.pipeline_mode<synchronous>, transform_indices = @transform_2, window_bounds = array<i64: 8, 128>}, {pipeline_mode = #tpu.pipeline_mode<synchronous>, transform_indices = @transform_3, window_bounds = array<i64: 8, 128>}, {pipeline_mode = #tpu.pipeline_mode<synchronous>, transform_indices = @transform_4, window_bounds = array<i64: 128, 512>}, {pipeline_mode = #tpu.pipeline_mode<synchronous>, transform_indices = @transform_5, window_bounds = array<i64: 128, 512>}, {pipeline_mode = #tpu.pipeline_mode<synchronous>, transform_indices = @transform_6, window_bounds = array<i64: 1, 512>}, {pipeline_mode = #tpu.pipeline_mode<synchronous>, transform_indices = @transform_7, window_bounds = array<i64: 128, 128>}, {pipeline_mode = #tpu.pipeline_mode<synchronous>, transform_indices = @transform_8, window_bounds = array<i64: 128, 128>}, {pipeline_mode = #tpu.pipeline_mode<synchronous>, transform_indices = @transform_9, window_bounds = array<i64: 1, 128>}, {transform_indices = @transform_10, window_bounds = array<i64: 1, 128, 256>}, {pipeline_mode = #tpu.pipeline_mode<synchronous>, transform_indices = @transform_11, window_bounds = array<i64: 1, 1024>}, {pipeline_mode = #tpu.pipeline_mode<synchronous>, transform_indices = @transform_12, window_bounds = array<i64: 1, 128>}, {pipeline_mode = #tpu.pipeline_mode<synchronous>, transform_indices = @transform_13, window_bounds = array<i64: 1, 128>}, {pipeline_mode = #tpu.pipeline_mode<synchronous>, transform_indices = @transform_14, window_bounds = array<i64: 1, 128>}, {pipeline_mode = #tpu.pipeline_mode<synchronous>, transform_indices = @transform_15, window_bounds = array<i64: 1, 128>}, {pipeline_mode = #tpu.pipeline_mode<synchronous>, transform_indices = @transform_16, window_bounds = array<i64: 1, 1>}, {pipeline_mode = #tpu.pipeline_mode<synchronous>, transform_indices = @transform_17, window_bounds = array<i64: 8, 1024>}, {pipeline_mode = #tpu.pipeline_mode<synchronous>, transform_indices = @transform_18, window_bounds = array<i64: 8, 128>}, {pipeline_mode = #tpu.pipeline_mode<synchronous>, transform_indices = @transform_19, window_bounds = array<i64: 8, 128>}, {pipeline_mode = #tpu.pipeline_mode<synchronous>, transform_indices = @transform_20, window_bounds = array<i64: 8, 1>}]} {
    %c0_i32 = arith.constant 0 : i32
    %0 = arith.cmpi eq, %arg0, %c0_i32 : i32
    %1 = arith.extui %0 : i1 to i32
    %c0_i32_0 = arith.constant 0 : i32
    %2 = arith.cmpi ne, %1, %c0_i32_0 : i32
    scf.if %2 {
      %c0_13 = arith.constant 0 : index
      %c0_14 = arith.constant 0 : index
      %24 = vector.load %arg1[%c0_13, %c0_14] : memref<8x128xf32, #tpu.memory_space<vmem>>, vector<8x128xf32>
      %c0_15 = arith.constant 0 : index
      %c0_16 = arith.constant 0 : index
      %25 = vector.load %arg2[%c0_15, %c0_16] : memref<8x128xf32, #tpu.memory_space<vmem>>, vector<8x128xf32>
      %c0_17 = arith.constant 0 : index
      %c0_18 = arith.constant 0 : index
      %26 = vector.load %arg3[%c0_17, %c0_18] : memref<8x128xf32, #tpu.memory_space<vmem>>, vector<8x128xf32>
      %c0_19 = arith.constant 0 : index
      %c0_20 = arith.constant 0 : index
      %27 = vector.load %arg4[%c0_19, %c0_20] : memref<8x128xf32, #tpu.memory_space<vmem>>, vector<8x128xf32>
      %28 = arith.truncf %24 : vector<8x128xf32> to vector<8x128xbf16>
      %c0_21 = arith.constant 0 : index
      %c0_22 = arith.constant 0 : index
      %29 = vector.load %arg5[%c0_21, %c0_22] : memref<128x512xbf16, #tpu.memory_space<vmem>>, vector<128x512xbf16>
      %cst_23 = arith.constant dense<0.000000e+00> : vector<8x512xf32>
      %30 = tpu.matmul %28, %29, %cst_23 {dimension_numbers = #tpu.dot_dimension_numbers<[1], [0], [0], [1], [0, 0, 1, 1], [], []>} : vector<8x128xbf16>, vector<128x512xbf16>, vector<8x512xf32> -> vector<8x512xf32>
      %31 = arith.truncf %25 : vector<8x128xf32> to vector<8x128xbf16>
      %c0_24 = arith.constant 0 : index
      %c0_25 = arith.constant 0 : index
      %32 = vector.load %arg6[%c0_24, %c0_25] : memref<128x512xbf16, #tpu.memory_space<vmem>>, vector<128x512xbf16>
      %cst_26 = arith.constant dense<0.000000e+00> : vector<8x512xf32>
      %33 = tpu.matmul %31, %32, %cst_26 {dimension_numbers = #tpu.dot_dimension_numbers<[1], [0], [0], [1], [0, 0, 1, 1], [], []>} : vector<8x128xbf16>, vector<128x512xbf16>, vector<8x512xf32> -> vector<8x512xf32>
      %34 = arith.addf %30, %33 : vector<8x512xf32>
      %c0_27 = arith.constant 0 : index
      %c0_28 = arith.constant 0 : index
      %35 = vector.load %arg7[%c0_27, %c0_28] : memref<1x512xf32, #tpu.memory_space<vmem>>, vector<1x512xf32>
      %36 = vector.broadcast %35 : vector<1x512xf32> to vector<8x512xf32>
      %37 = arith.addf %34, %36 : vector<8x512xf32>
      %38 = vector.extract_strided_slice %37 {offsets = [0, 0], sizes = [8, 128], strides = [1, 1]} : vector<8x512xf32> to vector<8x128xf32>
      %39 = arith.negf %38 : vector<8x128xf32>
      %40 = math.exp %39 : vector<8x128xf32>
      %cst_29 = arith.constant 1.000000e+00 : f32
      %41 = vector.broadcast %cst_29 : f32 to vector<8x128xf32>
      %42 = arith.addf %41, %40 : vector<8x128xf32>
      %43 = arith.divf %41, %42 : vector<8x128xf32>
      %44 = vector.extract_strided_slice %37 {offsets = [0, 128], sizes = [8, 128], strides = [1, 1]} : vector<8x512xf32> to vector<8x128xf32>
      %45 = arith.negf %44 : vector<8x128xf32>
      %46 = math.exp %45 : vector<8x128xf32>
      %cst_30 = arith.constant 1.000000e+00 : f32
      %47 = vector.broadcast %cst_30 : f32 to vector<8x128xf32>
      %48 = arith.addf %47, %46 : vector<8x128xf32>
      %49 = arith.divf %47, %48 : vector<8x128xf32>
      %50 = vector.extract_strided_slice %37 {offsets = [0, 256], sizes = [8, 128], strides = [1, 1]} : vector<8x512xf32> to vector<8x128xf32>
      %51 = math.tanh %50 : vector<8x128xf32>
      %52 = vector.extract_strided_slice %37 {offsets = [0, 384], sizes = [8, 128], strides = [1, 1]} : vector<8x512xf32> to vector<8x128xf32>
      %53 = arith.negf %52 : vector<8x128xf32>
      %54 = math.exp %53 : vector<8x128xf32>
      %cst_31 = arith.constant 1.000000e+00 : f32
      %55 = vector.broadcast %cst_31 : f32 to vector<8x128xf32>
      %56 = arith.addf %55, %54 : vector<8x128xf32>
      %57 = arith.divf %55, %56 : vector<8x128xf32>
      %58 = arith.mulf %49, %26 : vector<8x128xf32>
      %59 = arith.mulf %43, %51 : vector<8x128xf32>
      %60 = arith.addf %58, %59 : vector<8x128xf32>
      %61 = math.tanh %60 : vector<8x128xf32>
      %62 = arith.mulf %57, %61 : vector<8x128xf32>
      %c0_32 = arith.constant 0 : index
      %c0_33 = arith.constant 0 : index
      %63 = vector.load %arg23[%c0_32, %c0_33] : memref<8x128xf32, #tpu.memory_space<vmem>>, vector<8x128xf32>
      tpu.vector_store %arg23[%c0_32, %c0_33], %62 {strides = array<i32>} : memref<8x128xf32, #tpu.memory_space<vmem>>, vector<8x128xf32>,
      %c0_34 = arith.constant 0 : index
      %c0_35 = arith.constant 0 : index
      %64 = vector.load %arg24[%c0_34, %c0_35] : memref<8x128xf32, #tpu.memory_space<vmem>>, vector<8x128xf32>
      tpu.vector_store %arg24[%c0_34, %c0_35], %60 {strides = array<i32>} : memref<8x128xf32, #tpu.memory_space<vmem>>, vector<8x128xf32>,
      %65 = arith.truncf %62 : vector<8x128xf32> to vector<8x128xbf16>
      %c0_36 = arith.constant 0 : index
      %c0_37 = arith.constant 0 : index
      %66 = vector.load %arg8[%c0_36, %c0_37] : memref<128x128xbf16, #tpu.memory_space<vmem>>, vector<128x128xbf16>
      %cst_38 = arith.constant dense<0.000000e+00> : vector<8x128xf32>
      %67 = tpu.matmul %65, %66, %cst_38 {dimension_numbers = #tpu.dot_dimension_numbers<[1], [0], [0], [1], [0, 0, 1, 1], [], []>} : vector<8x128xbf16>, vector<128x128xbf16>, vector<8x128xf32> -> vector<8x128xf32>
      %68 = arith.truncf %27 : vector<8x128xf32> to vector<8x128xbf16>
      %c0_39 = arith.constant 0 : index
      %c0_40 = arith.constant 0 : index
      %69 = vector.load %arg9[%c0_39, %c0_40] : memref<128x128xbf16, #tpu.memory_space<vmem>>, vector<128x128xbf16>
      %cst_41 = arith.constant dense<0.000000e+00> : vector<8x128xf32>
      %70 = tpu.matmul %68, %69, %cst_41 {dimension_numbers = #tpu.dot_dimension_numbers<[1], [0], [0], [1], [0, 0, 1, 1], [], []>} : vector<8x128xbf16>, vector<128x128xbf16>, vector<8x128xf32> -> vector<8x128xf32>
      %71 = arith.addf %67, %70 : vector<8x128xf32>
      %c0_42 = arith.constant 0 : index
      %c0_43 = arith.constant 0 : index
      %72 = vector.load %arg10[%c0_42, %c0_43] : memref<1x128xf32, #tpu.memory_space<vmem>>, vector<1x128xf32>
      %73 = vector.broadcast %72 : vector<1x128xf32> to vector<8x128xf32>
      %74 = arith.addf %71, %73 : vector<8x128xf32>
      %c0_44 = arith.constant 0 : index
      %c0_45 = arith.constant 0 : index
      %75 = vector.load %arg22[%c0_44, %c0_45] : memref<8x128xf32, #tpu.memory_space<vmem>>, vector<8x128xf32>
      tpu.vector_store %arg22[%c0_44, %c0_45], %74 {strides = array<i32>} : memref<8x128xf32, #tpu.memory_space<vmem>>, vector<8x128xf32>,
      %c0_46 = arith.constant 0 : index
      %c0_47 = arith.constant 0 : index
      %76 = vector.load %arg13[%c0_46, %c0_47] : memref<1x128xf32, #tpu.memory_space<vmem>>, vector<1x128xf32>
      %77 = vector.broadcast %76 : vector<1x128xf32> to vector<8x128xf32>
      %78 = arith.mulf %27, %77 : vector<8x128xf32>
      %cst_48 = arith.constant dense<0.000000e+00> : vector<8xf32>
      %79 = vector.multi_reduction <add>, %78, %cst_48 [1] : vector<8x128xf32> to vector<8xf32>
      %80 = vector.shape_cast %79 : vector<8xf32> to vector<8x1xf32>
      %c0_49 = arith.constant 0 : index
      %c0_50 = arith.constant 0 : index
      %81 = vector.load %arg14[%c0_49, %c0_50] : memref<1x128xf32, #tpu.memory_space<vmem>>, vector<1x128xf32>
      %82 = vector.broadcast %81 : vector<1x128xf32> to vector<8x128xf32>
      %83 = arith.mulf %62, %82 : vector<8x128xf32>
      %cst_51 = arith.constant dense<0.000000e+00> : vector<8xf32>
      %84 = vector.multi_reduction <add>, %83, %cst_51 [1] : vector<8x128xf32> to vector<8xf32>
      %85 = vector.shape_cast %84 : vector<8xf32> to vector<8x1xf32>
      %86 = arith.addf %80, %85 : vector<8x1xf32>
      %c0_52 = arith.constant 0 : index
      %c0_53 = arith.constant 0 : index
      %87 = vector.load %arg15[%c0_52, %c0_53] : memref<1x128xf32, #tpu.memory_space<vmem>>, vector<1x128xf32>
      %88 = vector.broadcast %87 : vector<1x128xf32> to vector<8x128xf32>
      %89 = arith.mulf %60, %88 : vector<8x128xf32>
      %cst_54 = arith.constant dense<0.000000e+00> : vector<8xf32>
      %90 = vector.multi_reduction <add>, %89, %cst_54 [1] : vector<8x128xf32> to vector<8xf32>
      %91 = vector.shape_cast %90 : vector<8xf32> to vector<8x1xf32>
      %92 = arith.addf %86, %91 : vector<8x1xf32>
      %c0_55 = arith.constant 0 : index
      %c0_56 = arith.constant 0 : index
      %93 = vector.load %arg16[%c0_55, %c0_56] : memref<1x128xf32, #tpu.memory_space<vmem>>, vector<1x128xf32>
      %94 = vector.broadcast %93 : vector<1x128xf32> to vector<8x128xf32>
      %95 = arith.mulf %24, %94 : vector<8x128xf32>
      %cst_57 = arith.constant dense<0.000000e+00> : vector<8xf32>
      %96 = vector.multi_reduction <add>, %95, %cst_57 [1] : vector<8x128xf32> to vector<8xf32>
      %97 = vector.shape_cast %96 : vector<8xf32> to vector<8x1xf32>
      %98 = arith.addf %92, %97 : vector<8x1xf32>
      %c0_58 = arith.constant 0 : index
      %c0_59 = arith.constant 0 : index
      %99 = vector.load %arg17[%c0_58, %c0_59] : memref<1x1xf32, #tpu.memory_space<vmem>>, vector<1x1xf32>
      %100 = vector.broadcast %99 : vector<1x1xf32> to vector<8x1xf32>
      %101 = arith.addf %98, %100 : vector<8x1xf32>
      %102 = arith.negf %101 : vector<8x1xf32>
      %103 = math.exp %102 : vector<8x1xf32>
      %cst_60 = arith.constant 1.000000e+00 : f32
      %104 = vector.broadcast %cst_60 : f32 to vector<8x1xf32>
      %105 = arith.addf %104, %103 : vector<8x1xf32>
      %106 = arith.divf %104, %105 : vector<8x1xf32>
      %c0_61 = arith.constant 0 : index
      %c0_62 = arith.constant 0 : index
      %107 = vector.load %arg25[%c0_61, %c0_62] : memref<8x1xf32, #tpu.memory_space<vmem>>, vector<8x1xf32>
      tpu.vector_store %arg25[%c0_61, %c0_62], %106 {strides = array<i32>} : memref<8x1xf32, #tpu.memory_space<vmem>>, vector<8x1xf32>,
      %cst_63 = arith.constant 0xFF800000 : f32
      %108 = vector.broadcast %cst_63 : f32 to vector<8x1xf32>
      %c0_64 = arith.constant 0 : index
      %c0_65 = arith.constant 0 : index
      %109 = vector.load %arg26[%c0_64, %c0_65] : memref<8x1xf32, #tpu.memory_space<vmem>>, vector<8x1xf32>
      tpu.vector_store %arg26[%c0_64, %c0_65], %108 {strides = array<i32>} : memref<8x1xf32, #tpu.memory_space<vmem>>, vector<8x1xf32>,
    } else {
    }
    %c256_i32 = arith.constant 256 : i32
    %3 = arith.muli %arg0, %c256_i32 : i32
    %4 = tpu.assume_multiple %3, 256 : i32
    %c0 = arith.constant 0 : index
    %c0_1 = arith.constant 0 : index
    %5 = vector.load %arg22[%c0, %c0_1] : memref<8x128xf32, #tpu.memory_space<vmem>>, vector<8x128xf32>
    %6 = arith.truncf %5 : vector<8x128xf32> to vector<8x128xbf16>
    %c0_2 = arith.constant 0 : index
    %c0_3 = arith.constant 0 : index
    %c0_4 = arith.constant 0 : index
    %7 = vector.load %arg11[%c0_2, %c0_3, %c0_4] : memref<1x128x256xbf16, #tpu.memory_space<vmem>>, vector<1x128x256xbf16>
    %8 = vector.shape_cast %7 : vector<1x128x256xbf16> to vector<128x256xbf16>
    %cst = arith.constant dense<0.000000e+00> : vector<8x256xf32>
    %9 = tpu.matmul %6, %8, %cst {dimension_numbers = #tpu.dot_dimension_numbers<[1], [0], [0], [1], [0, 0, 1, 1], [], []>} : vector<8x128xbf16>, vector<128x256xbf16>, vector<8x256xf32> -> vector<8x256xf32>
    %c0_5 = arith.constant 0 : index
    %10 = arith.index_cast %4 : i32 to index
    %11 = vector.load %arg12[%c0_5, %10] : memref<1x1024xf32, #tpu.memory_space<vmem>>, vector<1x256xf32>
    %12 = vector.broadcast %11 : vector<1x256xf32> to vector<8x256xf32>
    %13 = arith.addf %9, %12 : vector<8x256xf32>
    %c0_6 = arith.constant 0 : index
    %14 = arith.index_cast %4 : i32 to index
    %15 = vector.load %arg27[%c0_6, %14] : memref<8x1024xf32, #tpu.memory_space<vmem>>, vector<8x256xf32>
    tpu.vector_store %arg27[%c0_6, %14], %13 {strides = array<i32>} : memref<8x1024xf32, #tpu.memory_space<vmem>>, vector<8x256xf32>,
    %c0_7 = arith.constant 0 : index
    %c0_8 = arith.constant 0 : index
    %16 = vector.load %arg26[%c0_7, %c0_8] : memref<8x1xf32, #tpu.memory_space<vmem>>, vector<8x1xf32>
    %cst_9 = arith.constant dense<0xFF800000> : vector<8xf32>
    %17 = vector.multi_reduction <maximumf>, %13, %cst_9 [1] : vector<8x256xf32> to vector<8xf32>
    %18 = vector.shape_cast %17 : vector<8xf32> to vector<8x1xf32>
    %19 = arith.maximumf %16, %18 : vector<8x1xf32>
    %c0_10 = arith.constant 0 : index
    %c0_11 = arith.constant 0 : index
    %20 = vector.load %arg26[%c0_10, %c0_11] : memref<8x1xf32, #tpu.memory_space<vmem>>, vector<8x1xf32>
    tpu.vector_store %arg26[%c0_10, %c0_11], %19 {strides = array<i32>} : memref<8x1xf32, #tpu.memory_space<vmem>>, vector<8x1xf32>,
    %c3_i32 = arith.constant 3 : i32
    %21 = arith.cmpi eq, %arg0, %c3_i32 : i32
    %22 = arith.extui %21 : i1 to i32
    %c0_i32_12 = arith.constant 0 : i32
    %23 = arith.cmpi ne, %22, %c0_i32_12 : i32
    scf.if %23 {
      %c0_13 = arith.constant 0 : index
      %c0_14 = arith.constant 0 : index
      %24 = vector.load %arg27[%c0_13, %c0_14] : memref<8x1024xf32, #tpu.memory_space<vmem>>, vector<8x1024xf32>
      %c0_15 = arith.constant 0 : index
      %c0_16 = arith.constant 0 : index
      %25 = vector.load %arg26[%c0_15, %c0_16] : memref<8x1xf32, #tpu.memory_space<vmem>>, vector<8x1xf32>
      %26 = vector.broadcast %25 : vector<8x1xf32> to vector<8x1024xf32>
      %27 = arith.subf %24, %26 : vector<8x1024xf32>
      %28 = math.exp %27 : vector<8x1024xf32>
      %cst_17 = arith.constant dense<0.000000e+00> : vector<8xf32>
      %29 = vector.multi_reduction <add>, %28, %cst_17 [1] : vector<8x1024xf32> to vector<8xf32>
      %30 = vector.shape_cast %29 : vector<8xf32> to vector<8x1xf32>
      %cst_18 = arith.constant 1.000000e+00 : f32
      %31 = vector.broadcast %cst_18 : f32 to vector<8x1xf32>
      %32 = arith.divf %31, %30 : vector<8x1xf32>
      %33 = vector.broadcast %32 : vector<8x1xf32> to vector<8x1024xf32>
      %34 = arith.mulf %28, %33 : vector<8x1024xf32>
      %c0_19 = arith.constant 0 : index
      %c0_20 = arith.constant 0 : index
      %35 = vector.load %arg18[%c0_19, %c0_20] : memref<8x1024xf32, #tpu.memory_space<vmem>>, vector<8x1024xf32>
      tpu.vector_store %arg18[%c0_19, %c0_20], %34 {strides = array<i32>} : memref<8x1024xf32, #tpu.memory_space<vmem>>, vector<8x1024xf32>,
      %c0_21 = arith.constant 0 : index
      %c0_22 = arith.constant 0 : index
      %36 = vector.load %arg23[%c0_21, %c0_22] : memref<8x128xf32, #tpu.memory_space<vmem>>, vector<8x128xf32>
      %c0_23 = arith.constant 0 : index
      %c0_24 = arith.constant 0 : index
      %37 = vector.load %arg19[%c0_23, %c0_24] : memref<8x128xf32, #tpu.memory_space<vmem>>, vector<8x128xf32>
      tpu.vector_store %arg19[%c0_23, %c0_24], %36 {strides = array<i32>} : memref<8x128xf32, #tpu.memory_space<vmem>>, vector<8x128xf32>,
      %c0_25 = arith.constant 0 : index
      %c0_26 = arith.constant 0 : index
      %38 = vector.load %arg24[%c0_25, %c0_26] : memref<8x128xf32, #tpu.memory_space<vmem>>, vector<8x128xf32>
      %c0_27 = arith.constant 0 : index
      %c0_28 = arith.constant 0 : index
      %39 = vector.load %arg20[%c0_27, %c0_28] : memref<8x128xf32, #tpu.memory_space<vmem>>, vector<8x128xf32>
      tpu.vector_store %arg20[%c0_27, %c0_28], %38 {strides = array<i32>} : memref<8x128xf32, #tpu.memory_space<vmem>>, vector<8x128xf32>,
      %c0_29 = arith.constant 0 : index
      %c0_30 = arith.constant 0 : index
      %40 = vector.load %arg25[%c0_29, %c0_30] : memref<8x1xf32, #tpu.memory_space<vmem>>, vector<8x1xf32>
      %c0_31 = arith.constant 0 : index
      %c0_32 = arith.constant 0 : index
      %41 = vector.load %arg21[%c0_31, %c0_32] : memref<8x1xf32, #tpu.memory_space<vmem>>, vector<8x1xf32>
      tpu.vector_store %arg21[%c0_31, %c0_32], %40 {strides = array<i32>} : memref<8x1xf32, #tpu.memory_space<vmem>>, vector<8x1xf32>,
    } else {
    }
    return
  }
  func.func @transform_0(%arg0: i32) -> (i32, i32) {
    %c0_i32 = arith.constant 0 : i32
    %c0_i32_0 = arith.constant 0 : i32
    %c0_i32_1 = arith.constant 0 : i32
    return %c0_i32, %c0_i32_0 : i32, i32
  }
  func.func @transform_1(%arg0: i32) -> (i32, i32) {
    %c0_i32 = arith.constant 0 : i32
    %c0_i32_0 = arith.constant 0 : i32
    %c0_i32_1 = arith.constant 0 : i32
    return %c0_i32, %c0_i32_0 : i32, i32
  }
  func.func @transform_2(%arg0: i32) -> (i32, i32) {
    %c0_i32 = arith.constant 0 : i32
    %c0_i32_0 = arith.constant 0 : i32
    %c0_i32_1 = arith.constant 0 : i32
    return %c0_i32, %c0_i32_0 : i32, i32
  }
  func.func @transform_3(%arg0: i32) -> (i32, i32) {
    %c0_i32 = arith.constant 0 : i32
    %c0_i32_0 = arith.constant 0 : i32
    %c0_i32_1 = arith.constant 0 : i32
    return %c0_i32, %c0_i32_0 : i32, i32
  }
  func.func @transform_4(%arg0: i32) -> (i32, i32) {
    %c0_i32 = arith.constant 0 : i32
    %c0_i32_0 = arith.constant 0 : i32
    %c0_i32_1 = arith.constant 0 : i32
    return %c0_i32, %c0_i32_0 : i32, i32
  }
  func.func @transform_5(%arg0: i32) -> (i32, i32) {
    %c0_i32 = arith.constant 0 : i32
    %c0_i32_0 = arith.constant 0 : i32
    %c0_i32_1 = arith.constant 0 : i32
    return %c0_i32, %c0_i32_0 : i32, i32
  }
  func.func @transform_6(%arg0: i32) -> (i32, i32) {
    %c0_i32 = arith.constant 0 : i32
    %c0_i32_0 = arith.constant 0 : i32
    %c0_i32_1 = arith.constant 0 : i32
    return %c0_i32, %c0_i32_0 : i32, i32
  }
  func.func @transform_7(%arg0: i32) -> (i32, i32) {
    %c0_i32 = arith.constant 0 : i32
    %c0_i32_0 = arith.constant 0 : i32
    %c0_i32_1 = arith.constant 0 : i32
    return %c0_i32, %c0_i32_0 : i32, i32
  }
  func.func @transform_8(%arg0: i32) -> (i32, i32) {
    %c0_i32 = arith.constant 0 : i32
    %c0_i32_0 = arith.constant 0 : i32
    %c0_i32_1 = arith.constant 0 : i32
    return %c0_i32, %c0_i32_0 : i32, i32
  }
  func.func @transform_9(%arg0: i32) -> (i32, i32) {
    %c0_i32 = arith.constant 0 : i32
    %c0_i32_0 = arith.constant 0 : i32
    %c0_i32_1 = arith.constant 0 : i32
    return %c0_i32, %c0_i32_0 : i32, i32
  }
  func.func @transform_10(%arg0: i32) -> (i32, i32, i32) {
    %c0_i32 = arith.constant 0 : i32
    %c0_i32_0 = arith.constant 0 : i32
    %c0_i32_1 = arith.constant 0 : i32
    return %arg0, %c0_i32, %c0_i32_0 : i32, i32, i32
  }
  func.func @transform_11(%arg0: i32) -> (i32, i32) {
    %c0_i32 = arith.constant 0 : i32
    %c0_i32_0 = arith.constant 0 : i32
    %c0_i32_1 = arith.constant 0 : i32
    return %c0_i32, %c0_i32_0 : i32, i32
  }
  func.func @transform_12(%arg0: i32) -> (i32, i32) {
    %c0_i32 = arith.constant 0 : i32
    %c0_i32_0 = arith.constant 0 : i32
    %c0_i32_1 = arith.constant 0 : i32
    return %c0_i32, %c0_i32_0 : i32, i32
  }
  func.func @transform_13(%arg0: i32) -> (i32, i32) {
    %c0_i32 = arith.constant 0 : i32
    %c0_i32_0 = arith.constant 0 : i32
    %c0_i32_1 = arith.constant 0 : i32
    return %c0_i32, %c0_i32_0 : i32, i32
  }
  func.func @transform_14(%arg0: i32) -> (i32, i32) {
    %c0_i32 = arith.constant 0 : i32
    %c0_i32_0 = arith.constant 0 : i32
    %c0_i32_1 = arith.constant 0 : i32
    return %c0_i32, %c0_i32_0 : i32, i32
  }
  func.func @transform_15(%arg0: i32) -> (i32, i32) {
    %c0_i32 = arith.constant 0 : i32
    %c0_i32_0 = arith.constant 0 : i32
    %c0_i32_1 = arith.constant 0 : i32
    return %c0_i32, %c0_i32_0 : i32, i32
  }
  func.func @transform_16(%arg0: i32) -> (i32, i32) {
    %c0_i32 = arith.constant 0 : i32
    %c0_i32_0 = arith.constant 0 : i32
    %c0_i32_1 = arith.constant 0 : i32
    return %c0_i32, %c0_i32_0 : i32, i32
  }
  func.func @transform_17(%arg0: i32) -> (i32, i32) {
    %c0_i32 = arith.constant 0 : i32
    %c0_i32_0 = arith.constant 0 : i32
    %c0_i32_1 = arith.constant 0 : i32
    return %c0_i32, %c0_i32_0 : i32, i32
  }
  func.func @transform_18(%arg0: i32) -> (i32, i32) {
    %c0_i32 = arith.constant 0 : i32
    %c0_i32_0 = arith.constant 0 : i32
    %c0_i32_1 = arith.constant 0 : i32
    return %c0_i32, %c0_i32_0 : i32, i32
  }
  func.func @transform_19(%arg0: i32) -> (i32, i32) {
    %c0_i32 = arith.constant 0 : i32
    %c0_i32_0 = arith.constant 0 : i32
    %c0_i32_1 = arith.constant 0 : i32
    return %c0_i32, %c0_i32_0 : i32, i32
  }
  func.func @transform_20(%arg0: i32) -> (i32, i32) {
    %c0_i32 = arith.constant 0 : i32
    %c0_i32_0 = arith.constant 0 : i32
    %c0_i32_1 = arith.constant 0 : i32
    return %c0_i32, %c0_i32_0 : i32, i32
  }
}

</mosaic_0001>

<llo_original>
// kernel: fwd.1
$region0: #{fwd.1}
  #allocation0 [shape = 'u32[]', space=smem, size = 0x4, offset = 0x4, fixed_abs, tag = 'smem constant byte address 0x4 - core index']
  #allocation1 [shape = 'u32[72,128]{1,0:T(1,128)}', space=vmem, size = 0x9000, scoped, tag = 'internal scratch']
  #allocation2 [shape = 'f32[8,128]{1,0:T(8,128)}', space=vmem, size = 0x1000, scoped, tag = 'scratch operand']
  #allocation3 [shape = 'f32[8,128]{1,0:T(8,128)}', space=vmem, size = 0x1000, scoped, tag = 'scratch operand']
  #allocation4 [shape = 'f32[8,128]{1,0:T(8,128)}', space=vmem, size = 0x1000, scoped, tag = 'scratch operand']
  #allocation5 [shape = 'f32[8,1]{1,0:T(8,128)}', space=vmem, size = 0x1000, scoped, tag = 'scratch operand']
  #allocation6 [shape = 'f32[8,1]{1,0:T(8,128)}', space=vmem, size = 0x1000, scoped, tag = 'scratch operand']
  #allocation7 [shape = 'f32[8,1024]{1,0:T(8,128)}', space=vmem, size = 0x8000, scoped, tag = 'scratch operand']
  #allocation8 [shape = 'f32[1,1]{1,0:T(1,128)S(1)}', space=vmem, size = 0x200, scoped, tag = 'scoped memory for fwd.1']
  %s0 = inlined_call_operand.vmem [shape: f32[8,128], index: 0, kind: input, shape index: {}]
  %s1 = inlined_call_operand.vmem [shape: f32[8,128], index: 1, kind: input, shape index: {}, may-alias: {1,18}]
  %s2 = inlined_call_operand.vmem [shape: f32[8,128], index: 2, kind: input, shape index: {}, may-alias: {2,19}]
  %s3 = inlined_call_operand.vmem [shape: f32[8,128], index: 3, kind: input, shape index: {}]
  %s4 = inlined_call_operand.hbm [shape: bf16[128,512], index: 4, kind: input, shape index: {}]
  %s5 = inlined_call_operand.hbm [shape: bf16[128,512], index: 5, kind: input, shape index: {}]
  %s6 = inlined_call_operand.vmem [shape: f32[1,512], index: 6, kind: input, shape index: {}]
  %s7 = inlined_call_operand.vmem [shape: bf16[128,128], index: 7, kind: input, shape index: {}]
  %s8 = inlined_call_operand.hbm [shape: bf16[128,128], index: 8, kind: input, shape index: {}]
  %s9 = inlined_call_operand.vmem [shape: f32[1,128], index: 9, kind: input, shape index: {}]
  %s10 = inlined_call_operand.hbm [shape: bf16[4,128,256], index: 10, kind: input, shape index: {}]
  %s11 = inlined_call_operand.vmem [shape: f32[1,1024], index: 11, kind: input, shape index: {}]
  %s12 = inlined_call_operand.vmem [shape: f32[1,128], index: 12, kind: input, shape index: {}]
  %s13 = inlined_call_operand.vmem [shape: f32[1,128], index: 13, kind: input, shape index: {}]
  %s14 = inlined_call_operand.vmem [shape: f32[1,128], index: 14, kind: input, shape index: {}]
  %s15 = inlined_call_operand.vmem [shape: f32[1,128], index: 15, kind: input, shape index: {}]
  %s16 = inlined_call_operand.<no memory space> [shape: f32[1,1], index: 16, kind: input, shape index: {}]
  %s17 = inlined_call_operand.vmem [shape: f32[8,1024], index: 17, kind: output, shape index: {0}]
  %s18 = inlined_call_operand.vmem [shape: f32[8,128], index: 18, kind: output, shape index: {1}, may-alias: {1,18}]
  %s19 = inlined_call_operand.vmem [shape: f32[8,128], index: 19, kind: output, shape index: {2}, may-alias: {2,19}]
  %s20 = inlined_call_operand.vmem [shape: f32[8,1], index: 20, kind: output, shape index: {3}]
  %21 = xla_tuple %s17, %s18, %s19, %s20
  %s22 = sld [smem:[#allocation0]]
  $region149: #{fwd.1} parent=0
    _
  %s24 = ssub.s32 1, %s22
  %s25 = scalar_select 0, %s24, %s22
  %v26 = vstv %s16
  %27 = vst [vmem:[#allocation8] sm:$0x1] %v26
  $region1: #{fwd.1} parent=0
    #allocation9 [shape = 'u8[131072]{0}', space=vmem, size = 0x20000, scoped, tag = 'input window, operand 4, single buffered']
    #allocation10 [shape = 's32[2]{0}', space=sflag, size = 0x8, scoped, tag = 'scoped memory for fwd.1']
    #allocation11 [shape = 'u8[131072]{0}', space=vmem, size = 0x20000, scoped, tag = 'input window, operand 5, single buffered']
    #allocation12 [shape = 's32[1]{0}', space=sflag, size = 0x4, scoped, tag = 'scoped memory for fwd.1']
    #allocation13 [shape = 'u8[32768]{0}', space=vmem, size = 0x8000, scoped, tag = 'input window, operand 8, single buffered']
    #allocation14 [shape = 'u8[131072]{0}', space=vmem, size = 0x20000, scoped, tag = 'input window, operand 10']
    #allocation15 [shape = 's32[2]{0}', space=sflag, size = 0x8, scoped, tag = 'scoped memory for fwd.1']
    %28 = vsyncpa [#allocation10], 0
    %29 = vsyncpa [#allocation12], 0
    %30 = vsyncpa [#allocation15], 0
    %s31 = scalar_lea.sflag [#allocation15], 1
    %32 = vsyncpa %s31, 0
    loop: start=0, step=1, limit=6
    $region2: #{fwd.1} parent=1 // loop_pre_header
      _
    $region3: #{fwd.1} parent=1 // loop_header
      %s34 = sphi 0, %s38
      %p35 = scmp.ge.s32.totalorder %s34, 6
      %s42 = sphi 0, %s42
      %s44 = sphi 0, %s42
      %s45 = sphi 0, %s44
      %s59 = sphi 0, %s45
      %s63 = sphi 0, %s63
      %s65 = sphi 0, %s63
      %s66 = sphi 0, %s65
      %s80 = sphi 0, %s66
      %s84 = sphi 0, %s84
      %s86 = sphi 0, %s84
      %s87 = sphi 0, %s86
      %s101 = sphi 0, %s87
      %s105 = sphi 0, %s105
      %s107 = sphi 0, %s105
      %s108 = sphi 0, %s107
      %s122 = sphi 0, %s108
      %s126 = sphi 0, %s126
      %s128 = sphi 0, %s126
      %s129 = sphi 0, %s128
      %s143 = sphi 0, %s129
      %s147 = sphi 0, %s147
      %s149 = sphi 0, %s147
      %s150 = sphi 0, %s149
      %s164 = sphi 0, %s150
      %s168 = sphi 0, %s168
      %s170 = sphi 0, %s168
      %s171 = sphi 0, %s170
      %s185 = sphi 0, %s171
      %s189 = sphi 0, %s189
      %s191 = sphi 0, %s189
      %s192 = sphi 0, %s191
      %s206 = sphi 0, %s192
      %s210 = sphi 0, %s210
      %s212 = sphi 0, %s210
      %s213 = sphi 0, %s212
      %s227 = sphi 0, %s213
      %s231 = sphi 0, %s231
      %s233 = sphi 0, %s231
      %s234 = sphi 0, %s233
      %s248 = sphi 0, %s234
      %s254 = sphi 0, %s256
      %s257 = sphi 0, %s254
      %s258 = sphi 0, %s257
      %s274 = sphi 0, %s258
      %s278 = sphi 0, %s278
      %s280 = sphi 0, %s278
      %s281 = sphi 0, %s280
      %s295 = sphi 0, %s281
      %s299 = sphi 0, %s299
      %s301 = sphi 0, %s299
      %s302 = sphi 0, %s301
      %s316 = sphi 0, %s302
      %s320 = sphi 0, %s320
      %s322 = sphi 0, %s320
      %s323 = sphi 0, %s322
      %s337 = sphi 0, %s323
      %s341 = sphi 0, %s341
      %s343 = sphi 0, %s341
      %s344 = sphi 0, %s343
      %s358 = sphi 0, %s344
      %s362 = sphi 0, %s362
      %s364 = sphi 0, %s362
      %s365 = sphi 0, %s364
      %s379 = sphi 0, %s365
      %s383 = sphi 0, %s383
      %s385 = sphi 0, %s383
      %s386 = sphi 0, %s385
      %s400 = sphi 0, %s386
      %s404 = sphi 0, %s404
      %s406 = sphi 0, %s404
      %s407 = sphi 0, %s406
      %s421 = sphi 0, %s407
      %s425 = sphi 0, %s425
      %s427 = sphi 0, %s425
      %s428 = sphi 0, %s427
      %s442 = sphi 0, %s428
      %s446 = sphi 0, %s446
      %s448 = sphi 0, %s446
      %s449 = sphi 0, %s448
      %s463 = sphi 0, %s449
      %s467 = sphi 0, %s467
      %s469 = sphi 0, %s467
      %s470 = sphi 0, %s469
      %s484 = sphi 0, %s470
    $region4: #{fwd.1} parent=1 // loop_header_branch
      %37 = sbr.rel (%p35) target = $region8
    $region5: #{fwd.1} parent=1 // loop_body
      %s39 = ssub.s32 %s34, 1
      %s40 = ssub.s32 %s34, 2
      %s41 = sadd.s32 %s34, 1
      %s43 = sadd.s32 %s42, 1
      %p46 = scmp.eq.s32.totalorder %s34, 3
      %p47 = scmp.ne.s32.totalorder %s42, %s44
      %p48 = scmp.eq.s32.totalorder %s34, 0
      %p49 = por %p47, %p48
      %p50 = scmp.ne.s32.totalorder %s42, %s44
      %p51 = scmp.eq.s32.totalorder %s39, 3
      %p52 = por %p50, %p51
      %p53 = scmp.ne.s32.totalorder %s44, %s45
      %p54 = scmp.eq.s32.totalorder %s39, 0
      %p55 = por %p53, %p54
      %p56 = scmp.ne.s32.totalorder %s44, %s45
      %p57 = scmp.eq.s32.totalorder %s40, 3
      %p58 = por %p56, %p57
      %p60 = scmp.ne.s32.totalorder %s45, %s59
      %p61 = scmp.eq.s32.totalorder %s40, 0
      %p62 = por %p60, %p61
      %s64 = sadd.s32 %s63, 1
      %p67 = scmp.eq.s32.totalorder %s34, 3
      %p68 = scmp.ne.s32.totalorder %s63, %s65
      %p69 = scmp.eq.s32.totalorder %s34, 0
      %p70 = por %p68, %p69
      %p71 = scmp.ne.s32.totalorder %s63, %s65
      %p72 = scmp.eq.s32.totalorder %s39, 3
      %p73 = por %p71, %p72
      %p74 = scmp.ne.s32.totalorder %s65, %s66
      %p75 = scmp.eq.s32.totalorder %s39, 0
      %p76 = por %p74, %p75
      %p77 = scmp.ne.s32.totalorder %s65, %s66
      %p78 = scmp.eq.s32.totalorder %s40, 3
      %p79 = por %p77, %p78
      %p81 = scmp.ne.s32.totalorder %s66, %s80
      %p82 = scmp.eq.s32.totalorder %s40, 0
      %p83 = por %p81, %p82
      %s85 = sadd.s32 %s84, 1
      %p88 = scmp.eq.s32.totalorder %s34, 3
      %p89 = scmp.ne.s32.totalorder %s84, %s86
      %p90 = scmp.eq.s32.totalorder %s34, 0
      %p91 = por %p89, %p90
      %p92 = scmp.ne.s32.totalorder %s84, %s86
      %p93 = scmp.eq.s32.totalorder %s39, 3
      %p94 = por %p92, %p93
      %p95 = scmp.ne.s32.totalorder %s86, %s87
      %p96 = scmp.eq.s32.totalorder %s39, 0
      %p97 = por %p95, %p96
      %p98 = scmp.ne.s32.totalorder %s86, %s87
      %p99 = scmp.eq.s32.totalorder %s40, 3
      %p100 = por %p98, %p99
      %p102 = scmp.ne.s32.totalorder %s87, %s101
      %p103 = scmp.eq.s32.totalorder %s40, 0
      %p104 = por %p102, %p103
      %s106 = sadd.s32 %s105, 1
      %p109 = scmp.eq.s32.totalorder %s34, 3
      %p110 = scmp.ne.s32.totalorder %s105, %s107
      %p111 = scmp.eq.s32.totalorder %s34, 0
      %p112 = por %p110, %p111
      %p113 = scmp.ne.s32.totalorder %s105, %s107
      %p114 = scmp.eq.s32.totalorder %s39, 3
      %p115 = por %p113, %p114
      %p116 = scmp.ne.s32.totalorder %s107, %s108
      %p117 = scmp.eq.s32.totalorder %s39, 0
      %p118 = por %p116, %p117
      %p119 = scmp.ne.s32.totalorder %s107, %s108
      %p120 = scmp.eq.s32.totalorder %s40, 3
      %p121 = por %p119, %p120
      %p123 = scmp.ne.s32.totalorder %s108, %s122
      %p124 = scmp.eq.s32.totalorder %s40, 0
      %p125 = por %p123, %p124
      %s127 = sadd.s32 %s126, 1
      %p130 = scmp.eq.s32.totalorder %s34, 3
      %p131 = scmp.ne.s32.totalorder %s126, %s128
      %p132 = scmp.eq.s32.totalorder %s34, 0
      %p133 = por %p131, %p132
      %p134 = scmp.ne.s32.totalorder %s126, %s128
      %p135 = scmp.eq.s32.totalorder %s39, 3
      %p136 = por %p134, %p135
      %p137 = scmp.ne.s32.totalorder %s128, %s129
      %p138 = scmp.eq.s32.totalorder %s39, 0
      %p139 = por %p137, %p138
      %p140 = scmp.ne.s32.totalorder %s128, %s129
      %p141 = scmp.eq.s32.totalorder %s40, 3
      %p142 = por %p140, %p141
      %p144 = scmp.ne.s32.totalorder %s129, %s143
      %p145 = scmp.eq.s32.totalorder %s40, 0
      %p146 = por %p144, %p145
      %s148 = sadd.s32 %s147, 1
      %p151 = scmp.eq.s32.totalorder %s34, 3
      %p152 = scmp.ne.s32.totalorder %s147, %s149
      %p153 = scmp.eq.s32.totalorder %s34, 0
      %p154 = por %p152, %p153
      %p155 = scmp.ne.s32.totalorder %s147, %s149
      %p156 = scmp.eq.s32.totalorder %s39, 3
      %p157 = por %p155, %p156
      %p158 = scmp.ne.s32.totalorder %s149, %s150
      %p159 = scmp.eq.s32.totalorder %s39, 0
      %p160 = por %p158, %p159
      %p161 = scmp.ne.s32.totalorder %s149, %s150
      %p162 = scmp.eq.s32.totalorder %s40, 3
      %p163 = por %p161, %p162
      %p165 = scmp.ne.s32.totalorder %s150, %s164
      %p166 = scmp.eq.s32.totalorder %s40, 0
      %p167 = por %p165, %p166
      %s169 = sadd.s32 %s168, 1
      %p172 = scmp.eq.s32.totalorder %s34, 3
      %p173 = scmp.ne.s32.totalorder %s168, %s170
      %p174 = scmp.eq.s32.totalorder %s34, 0
      %p175 = por %p173, %p174
      %p176 = scmp.ne.s32.totalorder %s168, %s170
      %p177 = scmp.eq.s32.totalorder %s39, 3
      %p178 = por %p176, %p177
      %p179 = scmp.ne.s32.totalorder %s170, %s171
      %p180 = scmp.eq.s32.totalorder %s39, 0
      %p181 = por %p179, %p180
      %p182 = scmp.ne.s32.totalorder %s170, %s171
      %p183 = scmp.eq.s32.totalorder %s40, 3
      %p184 = por %p182, %p183
      %p186 = scmp.ne.s32.totalorder %s171, %s185
      %p187 = scmp.eq.s32.totalorder %s40, 0
      %p188 = por %p186, %p187
      %s190 = sadd.s32 %s189, 1
      %p193 = scmp.eq.s32.totalorder %s34, 3
      %p194 = scmp.ne.s32.totalorder %s189, %s191
      %p195 = scmp.eq.s32.totalorder %s34, 0
      %p196 = por %p194, %p195
      %p197 = scmp.ne.s32.totalorder %s189, %s191
      %p198 = scmp.eq.s32.totalorder %s39, 3
      %p199 = por %p197, %p198
      %p200 = scmp.ne.s32.totalorder %s191, %s192
      %p201 = scmp.eq.s32.totalorder %s39, 0
      %p202 = por %p200, %p201
      %p203 = scmp.ne.s32.totalorder %s191, %s192
      %p204 = scmp.eq.s32.totalorder %s40, 3
      %p205 = por %p203, %p204
      %p207 = scmp.ne.s32.totalorder %s192, %s206
      %p208 = scmp.eq.s32.totalorder %s40, 0
      %p209 = por %p207, %p208
      %s211 = sadd.s32 %s210, 1
      %p214 = scmp.eq.s32.totalorder %s34, 3
      %p215 = scmp.ne.s32.totalorder %s210, %s212
      %p216 = scmp.eq.s32.totalorder %s34, 0
      %p217 = por %p215, %p216
      %p218 = scmp.ne.s32.totalorder %s210, %s212
      %p219 = scmp.eq.s32.totalorder %s39, 3
      %p220 = por %p218, %p219
      %p221 = scmp.ne.s32.totalorder %s212, %s213
      %p222 = scmp.eq.s32.totalorder %s39, 0
      %p223 = por %p221, %p222
      %p224 = scmp.ne.s32.totalorder %s212, %s213
      %p225 = scmp.eq.s32.totalorder %s40, 3
      %p226 = por %p224, %p225
      %p228 = scmp.ne.s32.totalorder %s213, %s227
      %p229 = scmp.eq.s32.totalorder %s40, 0
      %p230 = por %p228, %p229
      %s232 = sadd.s32 %s231, 1
      %p235 = scmp.eq.s32.totalorder %s34, 3
      %p236 = scmp.ne.s32.totalorder %s231, %s233
      %p237 = scmp.eq.s32.totalorder %s34, 0
      %p238 = por %p236, %p237
      %p239 = scmp.ne.s32.totalorder %s231, %s233
      %p240 = scmp.eq.s32.totalorder %s39, 3
      %p241 = por %p239, %p240
      %p242 = scmp.ne.s32.totalorder %s233, %s234
      %p243 = scmp.eq.s32.totalorder %s39, 0
      %p244 = por %p242, %p243
      %p245 = scmp.ne.s32.totalorder %s233, %s234
      %p246 = scmp.eq.s32.totalorder %s40, 3
      %p247 = por %p245, %p246
      %p249 = scmp.ne.s32.totalorder %s234, %s248
      %p250 = scmp.eq.s32.totalorder %s40, 0
      %p251 = por %p249, %p250
      %s252 = ssub.s32 %s34, %s41
      %p253 = scmp.eq.s32.totalorder %s252, 0
      %s255 = sadd.s32 %s254, 1
      %s256 = scalar_select %p253, %s254, %s255
      %p259 = pneg %p253
      %p260 = scmp.eq.s32.totalorder %s34, 3
      %p261 = por %p259, %p260
      %p262 = scmp.ne.s32.totalorder %s254, %s257
      %p263 = scmp.eq.s32.totalorder %s34, 0
      %p264 = por %p262, %p263
      %p265 = scmp.ne.s32.totalorder %s254, %s257
      %p266 = scmp.eq.s32.totalorder %s39, 3
      %p267 = por %p265, %p266
      %p268 = scmp.ne.s32.totalorder %s257, %s258
      %p269 = scmp.eq.s32.totalorder %s39, 0
      %p270 = por %p268, %p269
      %p271 = scmp.ne.s32.totalorder %s257, %s258
      %p272 = scmp.eq.s32.totalorder %s40, 3
      %p273 = por %p271, %p272
      %p275 = scmp.ne.s32.totalorder %s258, %s274
      %p276 = scmp.eq.s32.totalorder %s40, 0
      %p277 = por %p275, %p276
      %s279 = sadd.s32 %s278, 1
      %p282 = scmp.eq.s32.totalorder %s34, 3
      %p283 = scmp.ne.s32.totalorder %s278, %s280
      %p284 = scmp.eq.s32.totalorder %s34, 0
      %p285 = por %p283, %p284
      %p286 = scmp.ne.s32.totalorder %s278, %s280
      %p287 = scmp.eq.s32.totalorder %s39, 3
      %p288 = por %p286, %p287
      %p289 = scmp.ne.s32.totalorder %s280, %s281
      %p290 = scmp.eq.s32.totalorder %s39, 0
      %p291 = por %p289, %p290
      %p292 = scmp.ne.s32.totalorder %s280, %s281
      %p293 = scmp.eq.s32.totalorder %s40, 3
      %p294 = por %p292, %p293
      %p296 = scmp.ne.s32.totalorder %s281, %s295
      %p297 = scmp.eq.s32.totalorder %s40, 0
      %p298 = por %p296, %p297
      %s300 = sadd.s32 %s299, 1
      %p303 = scmp.eq.s32.totalorder %s34, 3
      %p304 = scmp.ne.s32.totalorder %s299, %s301
      %p305 = scmp.eq.s32.totalorder %s34, 0
      %p306 = por %p304, %p305
      %p307 = scmp.ne.s32.totalorder %s299, %s301
      %p308 = scmp.eq.s32.totalorder %s39, 3
      %p309 = por %p307, %p308
      %p310 = scmp.ne.s32.totalorder %s301, %s302
      %p311 = scmp.eq.s32.totalorder %s39, 0
      %p312 = por %p310, %p311
      %p313 = scmp.ne.s32.totalorder %s301, %s302
      %p314 = scmp.eq.s32.totalorder %s40, 3
      %p315 = por %p313, %p314
      %p317 = scmp.ne.s32.totalorder %s302, %s316
      %p318 = scmp.eq.s32.totalorder %s40, 0
      %p319 = por %p317, %p318
      %s321 = sadd.s32 %s320, 1
      %p324 = scmp.eq.s32.totalorder %s34, 3
      %p325 = scmp.ne.s32.totalorder %s320, %s322
      %p326 = scmp.eq.s32.totalorder %s34, 0
      %p327 = por %p325, %p326
      %p328 = scmp.ne.s32.totalorder %s320, %s322
      %p329 = scmp.eq.s32.totalorder %s39, 3
      %p330 = por %p328, %p329
      %p331 = scmp.ne.s32.totalorder %s322, %s323
      %p332 = scmp.eq.s32.totalorder %s39, 0
      %p333 = por %p331, %p332
      %p334 = scmp.ne.s32.totalorder %s322, %s323
      %p335 = scmp.eq.s32.totalorder %s40, 3
      %p336 = por %p334, %p335
      %p338 = scmp.ne.s32.totalorder %s323, %s337
      %p339 = scmp.eq.s32.totalorder %s40, 0
      %p340 = por %p338, %p339
      %s342 = sadd.s32 %s341, 1
      %p345 = scmp.eq.s32.totalorder %s34, 3
      %p346 = scmp.ne.s32.totalorder %s341, %s343
      %p347 = scmp.eq.s32.totalorder %s34, 0
      %p348 = por %p346, %p347
      %p349 = scmp.ne.s32.totalorder %s341, %s343
      %p350 = scmp.eq.s32.totalorder %s39, 3
      %p351 = por %p349, %p350
      %p352 = scmp.ne.s32.totalorder %s343, %s344
      %p353 = scmp.eq.s32.totalorder %s39, 0
      %p354 = por %p352, %p353
      %p355 = scmp.ne.s32.totalorder %s343, %s344
      %p356 = scmp.eq.s32.totalorder %s40, 3
      %p357 = por %p355, %p356
      %p359 = scmp.ne.s32.totalorder %s344, %s358
      %p360 = scmp.eq.s32.totalorder %s40, 0
      %p361 = por %p359, %p360
      %s363 = sadd.s32 %s362, 1
      %p366 = scmp.eq.s32.totalorder %s34, 3
      %p367 = scmp.ne.s32.totalorder %s362, %s364
      %p368 = scmp.eq.s32.totalorder %s34, 0
      %p369 = por %p367, %p368
      %p370 = scmp.ne.s32.totalorder %s362, %s364
      %p371 = scmp.eq.s32.totalorder %s39, 3
      %p372 = por %p370, %p371
      %p373 = scmp.ne.s32.totalorder %s364, %s365
      %p374 = scmp.eq.s32.totalorder %s39, 0
      %p375 = por %p373, %p374
      %p376 = scmp.ne.s32.totalorder %s364, %s365
      %p377 = scmp.eq.s32.totalorder %s40, 3
      %p378 = por %p376, %p377
      %p380 = scmp.ne.s32.totalorder %s365, %s379
      %p381 = scmp.eq.s32.totalorder %s40, 0
      %p382 = por %p380, %p381
      %s384 = sadd.s32 %s383, 1
      %p387 = scmp.eq.s32.totalorder %s34, 3
      %p388 = scmp.ne.s32.totalorder %s383, %s385
      %p389 = scmp.eq.s32.totalorder %s34, 0
      %p390 = por %p388, %p389
      %p391 = scmp.ne.s32.totalorder %s383, %s385
      %p392 = scmp.eq.s32.totalorder %s39, 3
      %p393 = por %p391, %p392
      %p394 = scmp.ne.s32.totalorder %s385, %s386
      %p395 = scmp.eq.s32.totalorder %s39, 0
      %p396 = por %p394, %p395
      %p397 = scmp.ne.s32.totalorder %s385, %s386
      %p398 = scmp.eq.s32.totalorder %s40, 3
      %p399 = por %p397, %p398
      %p401 = scmp.ne.s32.totalorder %s386, %s400
      %p402 = scmp.eq.s32.totalorder %s40, 0
      %p403 = por %p401, %p402
      %s405 = sadd.s32 %s404, 1
      %p408 = scmp.eq.s32.totalorder %s34, 3
      %p409 = scmp.ne.s32.totalorder %s404, %s406
      %p410 = scmp.eq.s32.totalorder %s34, 0
      %p411 = por %p409, %p410
      %p412 = scmp.ne.s32.totalorder %s404, %s406
      %p413 = scmp.eq.s32.totalorder %s39, 3
      %p414 = por %p412, %p413
      %p415 = scmp.ne.s32.totalorder %s406, %s407
      %p416 = scmp.eq.s32.totalorder %s39, 0
      %p417 = por %p415, %p416
      %p418 = scmp.ne.s32.totalorder %s406, %s407
      %p419 = scmp.eq.s32.totalorder %s40, 3
      %p420 = por %p418, %p419
      %p422 = scmp.ne.s32.totalorder %s407, %s421
      %p423 = scmp.eq.s32.totalorder %s40, 0
      %p424 = por %p422, %p423
      %s426 = sadd.s32 %s425, 1
      %p429 = scmp.eq.s32.totalorder %s34, 3
      %p430 = scmp.ne.s32.totalorder %s425, %s427
      %p431 = scmp.eq.s32.totalorder %s34, 0
      %p432 = por %p430, %p431
      %p433 = scmp.ne.s32.totalorder %s425, %s427
      %p434 = scmp.eq.s32.totalorder %s39, 3
      %p435 = por %p433, %p434
      %p436 = scmp.ne.s32.totalorder %s427, %s428
      %p437 = scmp.eq.s32.totalorder %s39, 0
      %p438 = por %p436, %p437
      %p439 = scmp.ne.s32.totalorder %s427, %s428
      %p440 = scmp.eq.s32.totalorder %s40, 3
      %p441 = por %p439, %p440
      %p443 = scmp.ne.s32.totalorder %s428, %s442
      %p444 = scmp.eq.s32.totalorder %s40, 0
      %p445 = por %p443, %p444
      %s447 = sadd.s32 %s446, 1
      %p450 = scmp.eq.s32.totalorder %s34, 3
      %p451 = scmp.ne.s32.totalorder %s446, %s448
      %p452 = scmp.eq.s32.totalorder %s34, 0
      %p453 = por %p451, %p452
      %p454 = scmp.ne.s32.totalorder %s446, %s448
      %p455 = scmp.eq.s32.totalorder %s39, 3
      %p456 = por %p454, %p455
      %p457 = scmp.ne.s32.totalorder %s448, %s449
      %p458 = scmp.eq.s32.totalorder %s39, 0
      %p459 = por %p457, %p458
      %p460 = scmp.ne.s32.totalorder %s448, %s449
      %p461 = scmp.eq.s32.totalorder %s40, 3
      %p462 = por %p460, %p461
      %p464 = scmp.ne.s32.totalorder %s449, %s463
      %p465 = scmp.eq.s32.totalorder %s40, 0
      %p466 = por %p464, %p465
      %s468 = sadd.s32 %s467, 1
      %p471 = scmp.eq.s32.totalorder %s34, 3
      %p472 = scmp.ne.s32.totalorder %s467, %s469
      %p473 = scmp.eq.s32.totalorder %s34, 0
      %p474 = por %p472, %p473
      %p475 = scmp.ne.s32.totalorder %s467, %s469
      %p476 = scmp.eq.s32.totalorder %s39, 3
      %p477 = por %p475, %p476
      %p478 = scmp.ne.s32.totalorder %s469, %s470
      %p479 = scmp.eq.s32.totalorder %s39, 0
      %p480 = por %p478, %p479
      %p481 = scmp.ne.s32.totalorder %s469, %s470
      %p482 = scmp.eq.s32.totalorder %s40, 3
      %p483 = por %p481, %p482
      %p485 = scmp.ne.s32.totalorder %s470, %s484
      %p486 = scmp.eq.s32.totalorder %s40, 0
      %p487 = por %p485, %p486
      %p488 = scmp.le.s32.totalorder 1, %s34
      %p489 = scmp.lt.s32.totalorder %s34, 5
      %p490 = pnand %p488, %p489
      %p491 = pneg %p490
      // Predicated region
      $region9: #{fwd.1} parent=5 // pred_check
        _
      $region10: #{fwd.1} parent=5 // pred_check_branch
        %493 = sbr.rel (%p490) target = $region12
      $region11: #{fwd.1} parent=5 // pred_region
        %s494 = ssub.s32 %s34, 1
        // Predicated region
        $region13: #{fwd.1} parent=11 // pred_check
          %p495 = pneg %p55
        $region14: #{fwd.1} parent=11 // pred_check_branch
          %497 = sbr.rel (%p495) target = $region16
        $region15: #{fwd.1} parent=11 // pred_region
          _
        $region16: #{fwd.1} parent=11 // pred_fallthru
          _
        // Predicated region
        $region17: #{fwd.1} parent=11 // pred_check
          %p498 = pneg %p76
        $region18: #{fwd.1} parent=11 // pred_check_branch
          %500 = sbr.rel (%p498) target = $region20
        $region19: #{fwd.1} parent=11 // pred_region
          _
        $region20: #{fwd.1} parent=11 // pred_fallthru
          _
        // Predicated region
        $region21: #{fwd.1} parent=11 // pred_check
          %p501 = pneg %p97
        $region22: #{fwd.1} parent=11 // pred_check_branch
          %503 = sbr.rel (%p501) target = $region24
        $region23: #{fwd.1} parent=11 // pred_region
          _
        $region24: #{fwd.1} parent=11 // pred_fallthru
          _
        // Predicated region
        $region25: #{fwd.1} parent=11 // pred_check
          %p504 = pneg %p118
        $region26: #{fwd.1} parent=11 // pred_check_branch
          %506 = sbr.rel (%p504) target = $region28
        $region27: #{fwd.1} parent=11 // pred_region
          _
        $region28: #{fwd.1} parent=11 // pred_fallthru
          _
        // Predicated region
        $region29: #{fwd.1} parent=11 // pred_check
          %p507 = pneg %p139
        $region30: #{fwd.1} parent=11 // pred_check_branch
          %509 = sbr.rel (%p507) target = $region32
        $region31: #{fwd.1} parent=11 // pred_region
          %511 = vsyncadd [#allocation10], 0
          %s512 = sshll.u32 %s4, 4
          %s513 = int_to_ptr.hbm [resolvable:$true] %s512
          %s514 = sshll.u32 [#allocation9], 4
          %s515 = int_to_ptr.vmem [resolvable:$true] %s514
          %520 = dma.hbm_to_vmem [thread:$0]  %s513, 4096, %s515, [#allocation10], 256, 256, 16
        $region32: #{fwd.1} parent=11 // pred_fallthru
          _
        // Predicated region
        $region33: #{fwd.1} parent=11 // pred_check
          %p521 = pneg %p160
        $region34: #{fwd.1} parent=11 // pred_check_branch
          %523 = sbr.rel (%p521) target = $region36
        $region35: #{fwd.1} parent=11 // pred_region
          %525 = vsyncadd [#allocation12], 0
          %s526 = sshll.u32 %s5, 4
          %s527 = int_to_ptr.hbm [resolvable:$true] %s526
          %s528 = sshll.u32 [#allocation11], 4
          %s529 = int_to_ptr.vmem [resolvable:$true] %s528
          %534 = dma.hbm_to_vmem [thread:$0]  %s527, 4096, %s529, [#allocation12], 256, 256, 16
        $region36: #{fwd.1} parent=11 // pred_fallthru
          _
        // Predicated region
        $region37: #{fwd.1} parent=11 // pred_check
          %p535 = pneg %p181
        $region38: #{fwd.1} parent=11 // pred_check_branch
          %537 = sbr.rel (%p535) target = $region40
        $region39: #{fwd.1} parent=11 // pred_region
          _
        $region40: #{fwd.1} parent=11 // pred_fallthru
          _
        // Predicated region
        $region41: #{fwd.1} parent=11 // pred_check
          %p538 = pneg %p202
        $region42: #{fwd.1} parent=11 // pred_check_branch
          %540 = sbr.rel (%p538) target = $region44
        $region43: #{fwd.1} parent=11 // pred_region
          _
        $region44: #{fwd.1} parent=11 // pred_fallthru
          _
        // Predicated region
        $region45: #{fwd.1} parent=11 // pred_check
          %p541 = pneg %p223
        $region46: #{fwd.1} parent=11 // pred_check_branch
          %543 = sbr.rel (%p541) target = $region48
        $region47: #{fwd.1} parent=11 // pred_region
          %545 = vsyncadd [#allocation12], 0
          %s546 = sshll.u32 %s8, 4
          %s547 = int_to_ptr.hbm [resolvable:$true] %s546
          %s548 = sshll.u32 [#allocation13], 4
          %s549 = int_to_ptr.vmem [resolvable:$true] %s548
          %554 = dma.hbm_to_vmem [thread:$0]  %s547, 1024, %s549, [#allocation12], 64, 64, 4
        $region48: #{fwd.1} parent=11 // pred_fallthru
          _
        // Predicated region
        $region49: #{fwd.1} parent=11 // pred_check
          %p555 = pneg %p244
        $region50: #{fwd.1} parent=11 // pred_check_branch
          %557 = sbr.rel (%p555) target = $region52
        $region51: #{fwd.1} parent=11 // pred_region
          _
        $region52: #{fwd.1} parent=11 // pred_fallthru
          _
        // Predicated region
        $region53: #{fwd.1} parent=11 // pred_check
          %p558 = pneg %p291
        $region54: #{fwd.1} parent=11 // pred_check_branch
          %560 = sbr.rel (%p558) target = $region56
        $region55: #{fwd.1} parent=11 // pred_region
          _
        $region56: #{fwd.1} parent=11 // pred_fallthru
          _
        // Predicated region
        $region57: #{fwd.1} parent=11 // pred_check
          %p561 = pneg %p312
        $region58: #{fwd.1} parent=11 // pred_check_branch
          %563 = sbr.rel (%p561) target = $region60
        $region59: #{fwd.1} parent=11 // pred_region
          _
        $region60: #{fwd.1} parent=11 // pred_fallthru
          _
        // Predicated region
        $region61: #{fwd.1} parent=11 // pred_check
          %p564 = pneg %p333
        $region62: #{fwd.1} parent=11 // pred_check_branch
          %566 = sbr.rel (%p564) target = $region64
        $region63: #{fwd.1} parent=11 // pred_region
          _
        $region64: #{fwd.1} parent=11 // pred_fallthru
          _
        // Predicated region
        $region65: #{fwd.1} parent=11 // pred_check
          %p567 = pneg %p354
        $region66: #{fwd.1} parent=11 // pred_check_branch
          %569 = sbr.rel (%p567) target = $region68
        $region67: #{fwd.1} parent=11 // pred_region
          _
        $region68: #{fwd.1} parent=11 // pred_fallthru
          _
        // Predicated region
        $region69: #{fwd.1} parent=11 // pred_check
          %p570 = pneg %p375
        $region70: #{fwd.1} parent=11 // pred_check_branch
          %572 = sbr.rel (%p570) target = $region72
        $region71: #{fwd.1} parent=11 // pred_region
          _
        $region72: #{fwd.1} parent=11 // pred_fallthru
          _
        // Predicated region
        $region73: #{fwd.1} parent=11 // pred_check
          %p573 = pneg %p396
        $region74: #{fwd.1} parent=11 // pred_check_branch
          %575 = sbr.rel (%p573) target = $region76
        $region75: #{fwd.1} parent=11 // pred_region
          _
        $region76: #{fwd.1} parent=11 // pred_fallthru
          _
      $region12: #{fwd.1} parent=5 // pred_fallthru
        _
      %p576 = scmp.lt.s32.totalorder %s34, 4
      // Predicated region
      $region77: #{fwd.1} parent=5 // pred_check
        %p577 = pneg %p576
      $region78: #{fwd.1} parent=5 // pred_check_branch
        %579 = sbr.rel (%p577) target = $region80
      $region79: #{fwd.1} parent=5 // pred_region
        // Predicated region
        $region81: #{fwd.1} parent=79 // pred_check
          %p580 = pneg %p264
        $region82: #{fwd.1} parent=79 // pred_check_branch
          %582 = sbr.rel (%p580) target = $region84
        $region83: #{fwd.1} parent=79 // pred_region
          %s583 = sand.u32 %s254, 1
          %s584 = scalar_lea.sflag [#allocation15], %s583
          %s585 = sand.u32 %s254, 1
          %s586 = smul.addr %s585, 128
          %s587 = scalar_lea.vmem [#allocation14], %s586
          %589 = vsyncadd %s584, 0
          %s590 = smul.addr %s34, 32
          %s591 = smul.addr %s590, 4
          %s592 = scalar_lea.hbm %s10, %s591
          %s593 = sshll.u32 %s592, 4
          %s594 = int_to_ptr.hbm [resolvable:$true] %s593
          %s595 = sshll.u32 %s587, 4
          %s596 = int_to_ptr.vmem [resolvable:$true] %s595
          %601 = dma.hbm_to_vmem [thread:$0]  %s594, 2048, %s596, %s584, 128, 128, 8
        $region84: #{fwd.1} parent=79 // pred_fallthru
          _
      $region80: #{fwd.1} parent=5 // pred_fallthru
        _
      %p602 = scmp.le.s32.totalorder 1, %s34
      %p603 = scmp.lt.s32.totalorder %s34, 5
      %p604 = pnand %p602, %p603
      %p605 = pneg %p604
      // Predicated region
      $region85: #{fwd.1} parent=5 // pred_check
        _
      $region86: #{fwd.1} parent=5 // pred_check_branch
        %607 = sbr.rel (%p604) target = $region88
      $region87: #{fwd.1} parent=5 // pred_region
        %s608 = ssub.s32 %s34, 1
        // Predicated region
        $region89: #{fwd.1} parent=87 // pred_check
          %p609 = pneg %p139
        $region90: #{fwd.1} parent=87 // pred_check_branch
          %611 = sbr.rel (%p609) target = $region92
        $region91: #{fwd.1} parent=87 // pred_region
          %613 = dma.done [#allocation10], 4096
        $region92: #{fwd.1} parent=87 // pred_fallthru
          _
        // Predicated region
        $region93: #{fwd.1} parent=87 // pred_check
          %p614 = pneg %p160
        $region94: #{fwd.1} parent=87 // pred_check_branch
          %616 = sbr.rel (%p614) target = $region96
        $region95: #{fwd.1} parent=87 // pred_region
          %618 = dma.done [#allocation12], 4096
        $region96: #{fwd.1} parent=87 // pred_fallthru
          _
        // Predicated region
        $region97: #{fwd.1} parent=87 // pred_check
          %p619 = pneg %p223
        $region98: #{fwd.1} parent=87 // pred_check_branch
          %621 = sbr.rel (%p619) target = $region100
        $region99: #{fwd.1} parent=87 // pred_region
          %623 = dma.done [#allocation12], 1024
        $region100: #{fwd.1} parent=87 // pred_fallthru
          _
        %s624 = sand.u32 %s257, 1
        %s625 = scalar_lea.sflag [#allocation15], %s624
        %s626 = sand.u32 %s257, 1
        %s627 = smul.addr %s626, 128
        %s628 = scalar_lea.vmem [#allocation14], %s627
        // Predicated region
        $region101: #{fwd.1} parent=87 // pred_check
          %p629 = pneg %p270
        $region102: #{fwd.1} parent=87 // pred_check_branch
          %631 = sbr.rel (%p629) target = $region104
        $region103: #{fwd.1} parent=87 // pred_region
          %633 = dma.done %s625, 2048
        $region104: #{fwd.1} parent=87 // pred_fallthru
          _
        %p634 = pneg %p55
        %p635 = pneg %p52
        %p636 = pneg %p76
        %p637 = pneg %p73
        %p638 = pneg %p97
        %p639 = pneg %p94
        %p640 = pneg %p118
        %p641 = pneg %p115
        %p642 = pneg %p139
        %p643 = pneg %p136
        %p644 = pneg %p160
        %p645 = pneg %p157
        %p646 = pneg %p181
        %p647 = pneg %p178
        %p648 = pneg %p202
        %p649 = pneg %p199
        %p650 = pneg %p223
        %p651 = pneg %p220
        %p652 = pneg %p244
        %p653 = pneg %p241
        %s654 = sand.u32 %s257, 1
        %s655 = scalar_lea.sflag [#allocation15], %s654
        %s656 = sand.u32 %s257, 1
        %s657 = smul.addr %s656, 128
        %s658 = scalar_lea.vmem [#allocation14], %s657
        %p659 = pneg %p270
        %p660 = pneg %p267
        %p661 = pneg %p291
        %p662 = pneg %p288
        %p663 = pneg %p312
        %p664 = pneg %p309
        %p665 = pneg %p333
        %p666 = pneg %p330
        %p667 = pneg %p354
        %p668 = pneg %p351
        %p669 = pneg %p375
        %p670 = pneg %p372
        %p671 = pneg %p396
        %p672 = pneg %p393
        %p673 = pneg %p417
        %p674 = pneg %p414
        %p675 = pneg %p438
        %p676 = pneg %p435
        %p677 = pneg %p459
        %p678 = pneg %p456
        %p679 = pneg %p480
        %p680 = pneg %p477
        %p681 = scmp.eq.s32.totalorder %s39, 0
        // Predicated region
        $region105: #{fwd.1} parent=87 // pred_check
          %p682 = pneg %p681
        $region106: #{fwd.1} parent=87 // pred_check_branch
          %684 = sbr.rel (%p682) target = $region108
        $region107: #{fwd.1} parent=87 // pred_region
          %v685 = vld [vmem:[%s0] sm:$0xff]
          %v686 = vld [vmem:[%s1] sm:$0xff]
          %v687 = vld [vmem:[%s2] sm:$0xff]
          %v688 = vld [vmem:[%s3] sm:$0xff]
          %v689 = vpack.c.bf16 %v685, %v685
          %v690 = vld [vmem:[#allocation9] sm:$0xff]
          %v691 = vld [vmem:[#allocation9 + $0x8] sm:$0xff]
          %v692 = vld [vmem:[#allocation9 + $0x10] sm:$0xff]
          %v693 = vld [vmem:[#allocation9 + $0x18] sm:$0xff]
          %v694 = vld [vmem:[#allocation9 + $0x20] sm:$0xff]
          %v695 = vld [vmem:[#allocation9 + $0x28] sm:$0xff]
          %v696 = vld [vmem:[#allocation9 + $0x30] sm:$0xff]
          %v697 = vld [vmem:[#allocation9 + $0x38] sm:$0xff]
          %v698 = vld [vmem:[#allocation9 + $0x40] sm:$0xff]
          %v699 = vld [vmem:[#allocation9 + $0x48] sm:$0xff]
          %v700 = vld [vmem:[#allocation9 + $0x50] sm:$0xff]
          %v701 = vld [vmem:[#allocation9 + $0x58] sm:$0xff]
          %v702 = vld [vmem:[#allocation9 + $0x60] sm:$0xff]
          %v703 = vld [vmem:[#allocation9 + $0x68] sm:$0xff]
          %v704 = vld [vmem:[#allocation9 + $0x70] sm:$0xff]
          %v705 = vld [vmem:[#allocation9 + $0x78] sm:$0xff]
          %v706 = vld [vmem:[#allocation9 + $0x80] sm:$0xff]
          %v707 = vld [vmem:[#allocation9 + $0x88] sm:$0xff]
          %v708 = vld [vmem:[#allocation9 + $0x90] sm:$0xff]
          %v709 = vld [vmem:[#allocation9 + $0x98] sm:$0xff]
          %v710 = vld [vmem:[#allocation9 + $0xa0] sm:$0xff]
          %v711 = vld [vmem:[#allocation9 + $0xa8] sm:$0xff]
          %v712 = vld [vmem:[#allocation9 + $0xb0] sm:$0xff]
          %v713 = vld [vmem:[#allocation9 + $0xb8] sm:$0xff]
          %v714 = vld [vmem:[#allocation9 + $0xc0] sm:$0xff]
          %v715 = vld [vmem:[#allocation9 + $0xc8] sm:$0xff]
          %v716 = vld [vmem:[#allocation9 + $0xd0] sm:$0xff]
          %v717 = vld [vmem:[#allocation9 + $0xd8] sm:$0xff]
          %v718 = vld [vmem:[#allocation9 + $0xe0] sm:$0xff]
          %v719 = vld [vmem:[#allocation9 + $0xe8] sm:$0xff]
          %v720 = vld [vmem:[#allocation9 + $0xf0] sm:$0xff]
          %v721 = vld [vmem:[#allocation9 + $0xf8] sm:$0xff]
          %v722 = vpack.c.bf16 %v686, %v686
          %v723 = vld [vmem:[#allocation11] sm:$0xff]
          %v724 = vld [vmem:[#allocation11 + $0x8] sm:$0xff]
          %v725 = vld [vmem:[#allocation11 + $0x10] sm:$0xff]
          %v726 = vld [vmem:[#allocation11 + $0x18] sm:$0xff]
          %v727 = vld [vmem:[#allocation11 + $0x20] sm:$0xff]
          %v728 = vld [vmem:[#allocation11 + $0x28] sm:$0xff]
          %v729 = vld [vmem:[#allocation11 + $0x30] sm:$0xff]
          %v730 = vld [vmem:[#allocation11 + $0x38] sm:$0xff]
          %v731 = vld [vmem:[#allocation11 + $0x40] sm:$0xff]
          %v732 = vld [vmem:[#allocation11 + $0x48] sm:$0xff]
          %v733 = vld [vmem:[#allocation11 + $0x50] sm:$0xff]
          %v734 = vld [vmem:[#allocation11 + $0x58] sm:$0xff]
          %v735 = vld [vmem:[#allocation11 + $0x60] sm:$0xff]
          %v736 = vld [vmem:[#allocation11 + $0x68] sm:$0xff]
          %v737 = vld [vmem:[#allocation11 + $0x70] sm:$0xff]
          %v738 = vld [vmem:[#allocation11 + $0x78] sm:$0xff]
          %v739 = vld [vmem:[#allocation11 + $0x80] sm:$0xff]
          %v740 = vld [vmem:[#allocation11 + $0x88] sm:$0xff]
          %v741 = vld [vmem:[#allocation11 + $0x90] sm:$0xff]
          %v742 = vld [vmem:[#allocation11 + $0x98] sm:$0xff]
          %v743 = vld [vmem:[#allocation11 + $0xa0] sm:$0xff]
          %v744 = vld [vmem:[#allocation11 + $0xa8] sm:$0xff]
          %v745 = vld [vmem:[#allocation11 + $0xb0] sm:$0xff]
          %v746 = vld [vmem:[#allocation11 + $0xb8] sm:$0xff]
          %v747 = vld [vmem:[#allocation11 + $0xc0] sm:$0xff]
          %v748 = vld [vmem:[#allocation11 + $0xc8] sm:$0xff]
          %v749 = vld [vmem:[#allocation11 + $0xd0] sm:$0xff]
          %v750 = vld [vmem:[#allocation11 + $0xd8] sm:$0xff]
          %v751 = vld [vmem:[#allocation11 + $0xe0] sm:$0xff]
          %v752 = vld [vmem:[#allocation11 + $0xe8] sm:$0xff]
          %v753 = vld [vmem:[#allocation11 + $0xf0] sm:$0xff]
          %v754 = vld [vmem:[#allocation11 + $0xf8] sm:$0xff]
          %v787 = vunpack.c.l.b16 %v723
          %v788 = vunpack.c.h.b16 %v723
          %v789 = vunpack.c.l.b16 %v724
          %v790 = vunpack.c.h.b16 %v724
          %v791 = vunpack.c.l.b16 %v725
          %v792 = vunpack.c.h.b16 %v725
          %v793 = vunpack.c.l.b16 %v726
          %v794 = vunpack.c.h.b16 %v726
          %v795 = vunpack.c.l.b16 %v727
          %v796 = vunpack.c.h.b16 %v727
          %v797 = vunpack.c.l.b16 %v728
          %v798 = vunpack.c.h.b16 %v728
          %v799 = vunpack.c.l.b16 %v729
          %v800 = vunpack.c.h.b16 %v729
          %v801 = vunpack.c.l.b16 %v730
          %v802 = vunpack.c.h.b16 %v730
          %v803 = vunpack.c.l.b16 %v731
          %v804 = vunpack.c.h.b16 %v731
          %v805 = vunpack.c.l.b16 %v732
          %v806 = vunpack.c.h.b16 %v732
          %v807 = vunpack.c.l.b16 %v733
          %v808 = vunpack.c.h.b16 %v733
          %v809 = vunpack.c.l.b16 %v734
          %v810 = vunpack.c.h.b16 %v734
          %v811 = vunpack.c.l.b16 %v735
          %v812 = vunpack.c.h.b16 %v735
          %v813 = vunpack.c.l.b16 %v736
          %v814 = vunpack.c.h.b16 %v736
          %v815 = vunpack.c.l.b16 %v737
          %v816 = vunpack.c.h.b16 %v737
          %v817 = vunpack.c.l.b16 %v738
          %v818 = vunpack.c.h.b16 %v738
          %v819 = vunpack.c.l.b16 %v739
          %v820 = vunpack.c.h.b16 %v739
          %v821 = vunpack.c.l.b16 %v740
          %v822 = vunpack.c.h.b16 %v740
          %v823 = vunpack.c.l.b16 %v741
          %v824 = vunpack.c.h.b16 %v741
          %v825 = vunpack.c.l.b16 %v742
          %v826 = vunpack.c.h.b16 %v742
          %v827 = vunpack.c.l.b16 %v743
          %v828 = vunpack.c.h.b16 %v743
          %v829 = vunpack.c.l.b16 %v744
          %v830 = vunpack.c.h.b16 %v744
          %v831 = vunpack.c.l.b16 %v745
          %v832 = vunpack.c.h.b16 %v745
          %v833 = vunpack.c.l.b16 %v746
          %v834 = vunpack.c.h.b16 %v746
          %v835 = vunpack.c.l.b16 %v747
          %v836 = vunpack.c.h.b16 %v747
          %v837 = vunpack.c.l.b16 %v748
          %v838 = vunpack.c.h.b16 %v748
          %v839 = vunpack.c.l.b16 %v749
          %v840 = vunpack.c.h.b16 %v749
          %v841 = vunpack.c.l.b16 %v750
          %v842 = vunpack.c.h.b16 %v750
          %v843 = vunpack.c.l.b16 %v751
          %v844 = vunpack.c.h.b16 %v751
          %v845 = vunpack.c.l.b16 %v752
          %v846 = vunpack.c.h.b16 %v752
          %v847 = vunpack.c.l.b16 %v753
          %v848 = vunpack.c.h.b16 %v753
          %v849 = vunpack.c.l.b16 %v754
          %v850 = vunpack.c.h.b16 %v754
          %v851 = vpack.c.b16 %v791, %v787
          %v852 = vpack.c.b16 %v792, %v788
          %v853 = vpack.c.b16 %v793, %v789
          %v854 = vpack.c.b16 %v794, %v790
          %v855 = vpack.c.b16 %v799, %v795
          %v856 = vpack.c.b16 %v800, %v796
          %v857 = vpack.c.b16 %v801, %v797
          %v858 = vpack.c.b16 %v802, %v798
          %v859 = vpack.c.b16 %v807, %v803
          %v860 = vpack.c.b16 %v808, %v804
          %v861 = vpack.c.b16 %v809, %v805
          %v862 = vpack.c.b16 %v810, %v806
          %v863 = vpack.c.b16 %v815, %v811
          %v864 = vpack.c.b16 %v816, %v812
          %v865 = vpack.c.b16 %v817, %v813
          %v866 = vpack.c.b16 %v818, %v814
          %v867 = vpack.c.b16 %v823, %v819
          %v868 = vpack.c.b16 %v824, %v820
          %v869 = vpack.c.b16 %v825, %v821
          %v870 = vpack.c.b16 %v826, %v822
          %v871 = vpack.c.b16 %v831, %v827
          %v872 = vpack.c.b16 %v832, %v828
          %v873 = vpack.c.b16 %v833, %v829
          %v874 = vpack.c.b16 %v834, %v830
          %v875 = vpack.c.b16 %v839, %v835
          %v876 = vpack.c.b16 %v840, %v836
          %v877 = vpack.c.b16 %v841, %v837
          %v878 = vpack.c.b16 %v842, %v838
          %v879 = vpack.c.b16 %v847, %v843
          %v880 = vpack.c.b16 %v848, %v844
          %v881 = vpack.c.b16 %v849, %v845
          %v882 = vpack.c.b16 %v850, %v846
          %915 = vmatpush.bf16.msra.mxu0 %v879
          %916 = vmatpush.bf16.msra.mxu0 %v875
          %917 = vmatpush.bf16.msra.mxu0 %v871
          %918 = vmatpush.bf16.msra.mxu0 %v867
          %919 = vmatpush.bf16.msra.mxu0 %v863
          %920 = vmatpush.bf16.msra.mxu0 %v859
          %921 = vmatpush.bf16.msra.mxu0 %v855
          %922 = vmatpush.bf16.msra.mxu0 %v851
          %923 = vmatmul.bf16.gmra.mxu0 %v722
          %v924 = vpop.f32.mrf.mxu0
          %v925 = vadd.f32 0.0, %v924
          %v926 = vpop.f32.mrf.mxu0
          %927 = vdwg.mxu0
          %928 = vmatpush.bf16.msra.mxu0 %v880
          %929 = vmatpush.bf16.msra.mxu0 %v876
          %930 = vmatpush.bf16.msra.mxu0 %v872
          %931 = vmatpush.bf16.msra.mxu0 %v868
          %932 = vmatpush.bf16.msra.mxu0 %v864
          %933 = vmatpush.bf16.msra.mxu0 %v860
          %934 = vmatpush.bf16.msra.mxu0 %v856
          %935 = vmatpush.bf16.msra.mxu0 %v852
          %936 = vmatmul.bf16.gmra.mxu0 %v722
          %v937 = vpop.f32.mrf.mxu0
          %v938 = vadd.f32 0.0, %v937
          %v939 = vpop.f32.mrf.mxu0
          %940 = vdwg.mxu0
          %941 = vmatpush.bf16.msra.mxu0 %v881
          %942 = vmatpush.bf16.msra.mxu0 %v877
          %943 = vmatpush.bf16.msra.mxu0 %v873
          %944 = vmatpush.bf16.msra.mxu0 %v869
          %945 = vmatpush.bf16.msra.mxu0 %v865
          %946 = vmatpush.bf16.msra.mxu0 %v861
          %947 = vmatpush.bf16.msra.mxu0 %v857
          %948 = vmatpush.bf16.msra.mxu0 %v853
          %949 = vmatmul.bf16.gmra.mxu0 %v722
          %v950 = vpop.f32.mrf.mxu0
          %v951 = vadd.f32 0.0, %v950
          %v952 = vpop.f32.mrf.mxu0
          %953 = vdwg.mxu0
          %954 = vmatpush.bf16.msra.mxu0 %v882
          %955 = vmatpush.bf16.msra.mxu0 %v878
          %956 = vmatpush.bf16.msra.mxu0 %v874
          %957 = vmatpush.bf16.msra.mxu0 %v870
          %958 = vmatpush.bf16.msra.mxu0 %v866
          %959 = vmatpush.bf16.msra.mxu0 %v862
          %960 = vmatpush.bf16.msra.mxu0 %v858
          %961 = vmatpush.bf16.msra.mxu0 %v854
          %962 = vmatmul.bf16.gmra.mxu0 %v722
          %v963 = vpop.f32.mrf.mxu0
          %v964 = vadd.f32 0.0, %v963
          %v965 = vpop.f32.mrf.mxu0
          %966 = vdwg.mxu0
          %v999 = vunpack.c.l.b16 %v690
          %v1000 = vunpack.c.h.b16 %v690
          %v1001 = vunpack.c.l.b16 %v691
          %v1002 = vunpack.c.h.b16 %v691
          %v1003 = vunpack.c.l.b16 %v692
          %v1004 = vunpack.c.h.b16 %v692
          %v1005 = vunpack.c.l.b16 %v693
          %v1006 = vunpack.c.h.b16 %v693
          %v1007 = vunpack.c.l.b16 %v694
          %v1008 = vunpack.c.h.b16 %v694
          %v1009 = vunpack.c.l.b16 %v695
          %v1010 = vunpack.c.h.b16 %v695
          %v1011 = vunpack.c.l.b16 %v696
          %v1012 = vunpack.c.h.b16 %v696
          %v1013 = vunpack.c.l.b16 %v697
          %v1014 = vunpack.c.h.b16 %v697
          %v1015 = vunpack.c.l.b16 %v698
          %v1016 = vunpack.c.h.b16 %v698
          %v1017 = vunpack.c.l.b16 %v699
          %v1018 = vunpack.c.h.b16 %v699
          %v1019 = vunpack.c.l.b16 %v700
          %v1020 = vunpack.c.h.b16 %v700
          %v1021 = vunpack.c.l.b16 %v701
          %v1022 = vunpack.c.h.b16 %v701
          %v1023 = vunpack.c.l.b16 %v702
          %v1024 = vunpack.c.h.b16 %v702
          %v1025 = vunpack.c.l.b16 %v703
          %v1026 = vunpack.c.h.b16 %v703
          %v1027 = vunpack.c.l.b16 %v704
          %v1028 = vunpack.c.h.b16 %v704
          %v1029 = vunpack.c.l.b16 %v705
          %v1030 = vunpack.c.h.b16 %v705
          %v1031 = vunpack.c.l.b16 %v706
          %v1032 = vunpack.c.h.b16 %v706
          %v1033 = vunpack.c.l.b16 %v707
          %v1034 = vunpack.c.h.b16 %v707
          %v1035 = vunpack.c.l.b16 %v708
          %v1036 = vunpack.c.h.b16 %v708
          %v1037 = vunpack.c.l.b16 %v709
          %v1038 = vunpack.c.h.b16 %v709
          %v1039 = vunpack.c.l.b16 %v710
          %v1040 = vunpack.c.h.b16 %v710
          %v1041 = vunpack.c.l.b16 %v711
          %v1042 = vunpack.c.h.b16 %v711
          %v1043 = vunpack.c.l.b16 %v712
          %v1044 = vunpack.c.h.b16 %v712
          %v1045 = vunpack.c.l.b16 %v713
          %v1046 = vunpack.c.h.b16 %v713
          %v1047 = vunpack.c.l.b16 %v714
          %v1048 = vunpack.c.h.b16 %v714
          %v1049 = vunpack.c.l.b16 %v715
          %v1050 = vunpack.c.h.b16 %v715
          %v1051 = vunpack.c.l.b16 %v716
          %v1052 = vunpack.c.h.b16 %v716
          %v1053 = vunpack.c.l.b16 %v717
          %v1054 = vunpack.c.h.b16 %v717
          %v1055 = vunpack.c.l.b16 %v718
          %v1056 = vunpack.c.h.b16 %v718
          %v1057 = vunpack.c.l.b16 %v719
          %v1058 = vunpack.c.h.b16 %v719
          %v1059 = vunpack.c.l.b16 %v720
          %v1060 = vunpack.c.h.b16 %v720
          %v1061 = vunpack.c.l.b16 %v721
          %v1062 = vunpack.c.h.b16 %v721
          %v1063 = vpack.c.b16 %v1003, %v999
          %v1064 = vpack.c.b16 %v1004, %v1000
          %v1065 = vpack.c.b16 %v1005, %v1001
          %v1066 = vpack.c.b16 %v1006, %v1002
          %v1067 = vpack.c.b16 %v1011, %v1007
          %v1068 = vpack.c.b16 %v1012, %v1008
          %v1069 = vpack.c.b16 %v1013, %v1009
          %v1070 = vpack.c.b16 %v1014, %v1010
          %v1071 = vpack.c.b16 %v1019, %v1015
          %v1072 = vpack.c.b16 %v1020, %v1016
          %v1073 = vpack.c.b16 %v1021, %v1017
          %v1074 = vpack.c.b16 %v1022, %v1018
          %v1075 = vpack.c.b16 %v1027, %v1023
          %v1076 = vpack.c.b16 %v1028, %v1024
          %v1077 = vpack.c.b16 %v1029, %v1025
          %v1078 = vpack.c.b16 %v1030, %v1026
          %v1079 = vpack.c.b16 %v1035, %v1031
          %v1080 = vpack.c.b16 %v1036, %v1032
          %v1081 = vpack.c.b16 %v1037, %v1033
          %v1082 = vpack.c.b16 %v1038, %v1034
          %v1083 = vpack.c.b16 %v1043, %v1039
          %v1084 = vpack.c.b16 %v1044, %v1040
          %v1085 = vpack.c.b16 %v1045, %v1041
          %v1086 = vpack.c.b16 %v1046, %v1042
          %v1087 = vpack.c.b16 %v1051, %v1047
          %v1088 = vpack.c.b16 %v1052, %v1048
          %v1089 = vpack.c.b16 %v1053, %v1049
          %v1090 = vpack.c.b16 %v1054, %v1050
          %v1091 = vpack.c.b16 %v1059, %v1055
          %v1092 = vpack.c.b16 %v1060, %v1056
          %v1093 = vpack.c.b16 %v1061, %v1057
          %v1094 = vpack.c.b16 %v1062, %v1058
          %1127 = vmatpush.bf16.msra.mxu0 %v1091
          %1128 = vmatpush.bf16.msra.mxu0 %v1087
          %1129 = vmatpush.bf16.msra.mxu0 %v1083
          %1130 = vmatpush.bf16.msra.mxu0 %v1079
          %1131 = vmatpush.bf16.msra.mxu0 %v1075
          %1132 = vmatpush.bf16.msra.mxu0 %v1071
          %1133 = vmatpush.bf16.msra.mxu0 %v1067
          %1134 = vmatpush.bf16.msra.mxu0 %v1063
          %1135 = vmatmul.bf16.gmra.mxu0 %v689
          %v1136 = vpop.f32.mrf.mxu0
          %v1137 = vadd.f32 %v925, %v1136
          %v1138 = vpop.f32.mrf.mxu0
          %1139 = vdwg.mxu0
          %1140 = vmatpush.bf16.msra.mxu0 %v1092
          %1141 = vmatpush.bf16.msra.mxu0 %v1088
          %1142 = vmatpush.bf16.msra.mxu0 %v1084
          %1143 = vmatpush.bf16.msra.mxu0 %v1080
          %1144 = vmatpush.bf16.msra.mxu0 %v1076
          %1145 = vmatpush.bf16.msra.mxu0 %v1072
          %1146 = vmatpush.bf16.msra.mxu0 %v1068
          %1147 = vmatpush.bf16.msra.mxu0 %v1064
          %1148 = vmatmul.bf16.gmra.mxu0 %v689
          %v1149 = vpop.f32.mrf.mxu0
          %v1150 = vadd.f32 %v938, %v1149
          %v1151 = vpop.f32.mrf.mxu0
          %1152 = vdwg.mxu0
          %1153 = vmatpush.bf16.msra.mxu0 %v1093
          %1154 = vmatpush.bf16.msra.mxu0 %v1089
          %1155 = vmatpush.bf16.msra.mxu0 %v1085
          %1156 = vmatpush.bf16.msra.mxu0 %v1081
          %1157 = vmatpush.bf16.msra.mxu0 %v1077
          %1158 = vmatpush.bf16.msra.mxu0 %v1073
          %1159 = vmatpush.bf16.msra.mxu0 %v1069
          %1160 = vmatpush.bf16.msra.mxu0 %v1065
          %1161 = vmatmul.bf16.gmra.mxu0 %v689
          %v1162 = vpop.f32.mrf.mxu0
          %v1163 = vadd.f32 %v951, %v1162
          %v1164 = vpop.f32.mrf.mxu0
          %1165 = vdwg.mxu0
          %1166 = vmatpush.bf16.msra.mxu0 %v1094
          %1167 = vmatpush.bf16.msra.mxu0 %v1090
          %1168 = vmatpush.bf16.msra.mxu0 %v1086
          %1169 = vmatpush.bf16.msra.mxu0 %v1082
          %1170 = vmatpush.bf16.msra.mxu0 %v1078
          %1171 = vmatpush.bf16.msra.mxu0 %v1074
          %1172 = vmatpush.bf16.msra.mxu0 %v1070
          %1173 = vmatpush.bf16.msra.mxu0 %v1066
          %1174 = vmatmul.bf16.gmra.mxu0 %v689
          %v1175 = vpop.f32.mrf.mxu0
          %v1176 = vadd.f32 %v964, %v1175
          %v1177 = vpop.f32.mrf.mxu0
          %1178 = vdwg.mxu0
          %v1179 = vld [vmem:[%s6] sm:$0xf]
          %v1181 = vperm.slane %v1179, 0
          %v1182 = vperm.slane %v1179, 1
          %v1183 = vperm.slane %v1179, 2
          %v1184 = vperm.slane %v1179, 3
          %v1189 = vadd.f32 %v1137, %v1181
          %v1190 = vadd.f32 %v1150, %v1182
          %v1191 = vadd.f32 %v1163, %v1183
          %v1192 = vadd.f32 %v1176, %v1184
          %v1193 = vxor.u32 %v1189, 2147483648
          %v1194 = vmul.f32 %v1193, 1.442695
          %v1195 = vpow.pop %v1194
          %v1196 = vadd.f32 %v1195, 1.0
          %v1197 = vrcp.pop %v1196
          %v1198 = vmul.f32 %v1196, %v1197
          %v1199 = vsub.f32 1.0, %v1198
          %v1200 = vmul.f32 %v1197, %v1199
          %v1201 = vadd.f32 %v1197, %v1200
          %vm1202 = vweird.f32 %v1196
          %vm1203 = vweird.f32 %v1197
          %vm1204 = vmor %vm1202, %vm1203
          %v1205 = vsel %vm1204, %v1197, %v1201
          %v1206 = vand.u32 2147483647, %v1196
          %vm1207 = vcmp.eq.f32.partialorder %v1206, 8.507059e+37
          %v1208 = vand.u32 %v1196, 2147483648
          %v1209 = vor.u32 1.1754944e-38, %v1208
          %v1210 = vsel %vm1207, %v1209, %v1205
          %v1211 = vmul.f32 1.0, %v1210
          %v1212 = vxor.u32 %v1190, 2147483648
          %v1213 = vmul.f32 %v1212, 1.442695
          %v1214 = vpow.pop %v1213
          %v1215 = vadd.f32 %v1214, 1.0
          %v1216 = vrcp.pop %v1215
          %v1217 = vmul.f32 %v1215, %v1216
          %v1218 = vsub.f32 1.0, %v1217
          %v1219 = vmul.f32 %v1216, %v1218
          %v1220 = vadd.f32 %v1216, %v1219
          %vm1221 = vweird.f32 %v1215
          %vm1222 = vweird.f32 %v1216
          %vm1223 = vmor %vm1221, %vm1222
          %v1224 = vsel %vm1223, %v1216, %v1220
          %v1225 = vand.u32 2147483647, %v1215
          %vm1226 = vcmp.eq.f32.partialorder %v1225, 8.507059e+37
          %v1227 = vand.u32 %v1215, 2147483648
          %v1228 = vor.u32 1.1754944e-38, %v1227
          %v1229 = vsel %vm1226, %v1228, %v1224
          %v1230 = vmul.f32 1.0, %v1229
          %v1231 = vtanh.pop %v1191
          %v1232 = vxor.u32 %v1192, 2147483648
          %v1233 = vmul.f32 %v1232, 1.442695
          %v1234 = vpow.pop %v1233
          %v1235 = vadd.f32 %v1234, 1.0
          %v1236 = vrcp.pop %v1235
          %v1237 = vmul.f32 %v1235, %v1236
          %v1238 = vsub.f32 1.0, %v1237
          %v1239 = vmul.f32 %v1236, %v1238
          %v1240 = vadd.f32 %v1236, %v1239
          %vm1241 = vweird.f32 %v1235
          %vm1242 = vweird.f32 %v1236
          %vm1243 = vmor %vm1241, %vm1242
          %v1244 = vsel %vm1243, %v1236, %v1240
          %v1245 = vand.u32 2147483647, %v1235
          %vm1246 = vcmp.eq.f32.partialorder %v1245, 8.507059e+37
          %v1247 = vand.u32 %v1235, 2147483648
          %v1248 = vor.u32 1.1754944e-38, %v1247
          %v1249 = vsel %vm1246, %v1248, %v1244
          %v1250 = vmul.f32 1.0, %v1249
          %v1251 = vmul.f32 %v1230, %v687
          %v1252 = vmul.f32 %v1211, %v1231
          %v1253 = vadd.f32 %v1251, %v1252
          %v1254 = vtanh.pop %v1253
          %v1255 = vmul.f32 %v1250, %v1254
          %1256 = vst [vmem:[#allocation3] sm:$0xff] %v1255
          %1257 = vst [vmem:[#allocation4] sm:$0xff] %v1253
          %v1258 = vpack.c.bf16 %v1255, %v1255
          %v1259 = vld [vmem:[%s7] sm:$0xf]
          %v1260 = vld [vmem:[%s7 + $0x4] sm:$0xf]
          %v1261 = vld [vmem:[%s7 + $0x8] sm:$0xf]
          %v1262 = vld [vmem:[%s7 + $0xc] sm:$0xf]
          %v1263 = vld [vmem:[%s7 + $0x10] sm:$0xf]
          %v1264 = vld [vmem:[%s7 + $0x14] sm:$0xf]
          %v1265 = vld [vmem:[%s7 + $0x18] sm:$0xf]
          %v1266 = vld [vmem:[%s7 + $0x1c] sm:$0xf]
          %v1267 = vld [vmem:[%s7 + $0x20] sm:$0xf]
          %v1268 = vld [vmem:[%s7 + $0x24] sm:$0xf]
          %v1269 = vld [vmem:[%s7 + $0x28] sm:$0xf]
          %v1270 = vld [vmem:[%s7 + $0x2c] sm:$0xf]
          %v1271 = vld [vmem:[%s7 + $0x30] sm:$0xf]
          %v1272 = vld [vmem:[%s7 + $0x34] sm:$0xf]
          %v1273 = vld [vmem:[%s7 + $0x38] sm:$0xf]
          %v1274 = vld [vmem:[%s7 + $0x3c] sm:$0xf]
          %v1275 = vpack.c.bf16 %v688, %v688
          %v1276 = vld [vmem:[#allocation13] sm:$0xf]
          %v1277 = vld [vmem:[#allocation13 + $0x4] sm:$0xf]
          %v1278 = vld [vmem:[#allocation13 + $0x8] sm:$0xf]
          %v1279 = vld [vmem:[#allocation13 + $0xc] sm:$0xf]
          %v1280 = vld [vmem:[#allocation13 + $0x10] sm:$0xf]
          %v1281 = vld [vmem:[#allocation13 + $0x14] sm:$0xf]
          %v1282 = vld [vmem:[#allocation13 + $0x18] sm:$0xf]
          %v1283 = vld [vmem:[#allocation13 + $0x1c] sm:$0xf]
          %v1284 = vld [vmem:[#allocation13 + $0x20] sm:$0xf]
          %v1285 = vld [vmem:[#allocation13 + $0x24] sm:$0xf]
          %v1286 = vld [vmem:[#allocation13 + $0x28] sm:$0xf]
          %v1287 = vld [vmem:[#allocation13 + $0x2c] sm:$0xf]
          %v1288 = vld [vmem:[#allocation13 + $0x30] sm:$0xf]
          %v1289 = vld [vmem:[#allocation13 + $0x34] sm:$0xf]
          %v1290 = vld [vmem:[#allocation13 + $0x38] sm:$0xf]
          %v1291 = vld [vmem:[#allocation13 + $0x3c] sm:$0xf]
          %v1308 = vunpack.c.l.b16 %v1276
          %v1309 = vunpack.c.l.b16 %v1277
          %v1310 = vunpack.c.l.b16 %v1278
          %v1311 = vunpack.c.l.b16 %v1279
          %v1312 = vunpack.c.l.b16 %v1280
          %v1313 = vunpack.c.l.b16 %v1281
          %v1314 = vunpack.c.l.b16 %v1282
          %v1315 = vunpack.c.l.b16 %v1283
          %v1316 = vunpack.c.l.b16 %v1284
          %v1317 = vunpack.c.l.b16 %v1285
          %v1318 = vunpack.c.l.b16 %v1286
          %v1319 = vunpack.c.l.b16 %v1287
          %v1320 = vunpack.c.l.b16 %v1288
          %v1321 = vunpack.c.l.b16 %v1289
          %v1322 = vunpack.c.l.b16 %v1290
          %v1323 = vunpack.c.l.b16 %v1291
          %v1324 = vpack.c.b16 %v1309, %v1308
          %v1325 = vpack.c.b16 %v1311, %v1310
          %v1326 = vpack.c.b16 %v1313, %v1312
          %v1327 = vpack.c.b16 %v1315, %v1314
          %v1328 = vpack.c.b16 %v1317, %v1316
          %v1329 = vpack.c.b16 %v1319, %v1318
          %v1330 = vpack.c.b16 %v1321, %v1320
          %v1331 = vpack.c.b16 %v1323, %v1322
          %1340 = vmatpush.bf16.msra.mxu0 %v1331
          %1341 = vmatpush.bf16.msra.mxu0 %v1330
          %1342 = vmatpush.bf16.msra.mxu0 %v1329
          %1343 = vmatpush.bf16.msra.mxu0 %v1328
          %1344 = vmatpush.bf16.msra.mxu0 %v1327
          %1345 = vmatpush.bf16.msra.mxu0 %v1326
          %1346 = vmatpush.bf16.msra.mxu0 %v1325
          %1347 = vmatpush.bf16.msra.mxu0 %v1324
          %1348 = vmatmul.bf16.gmra.mxu0 %v1275
          %v1349 = vpop.f32.mrf.mxu0
          %v1350 = vadd.f32 0.0, %v1349
          %v1351 = vpop.f32.mrf.mxu0
          %1352 = vdwg.mxu0
          %v1369 = vunpack.c.l.b16 %v1259
          %v1370 = vunpack.c.l.b16 %v1260
          %v1371 = vunpack.c.l.b16 %v1261
          %v1372 = vunpack.c.l.b16 %v1262
          %v1373 = vunpack.c.l.b16 %v1263
          %v1374 = vunpack.c.l.b16 %v1264
          %v1375 = vunpack.c.l.b16 %v1265
          %v1376 = vunpack.c.l.b16 %v1266
          %v1377 = vunpack.c.l.b16 %v1267
          %v1378 = vunpack.c.l.b16 %v1268
          %v1379 = vunpack.c.l.b16 %v1269
          %v1380 = vunpack.c.l.b16 %v1270
          %v1381 = vunpack.c.l.b16 %v1271
          %v1382 = vunpack.c.l.b16 %v1272
          %v1383 = vunpack.c.l.b16 %v1273
          %v1384 = vunpack.c.l.b16 %v1274
          %v1385 = vpack.c.b16 %v1370, %v1369
          %v1386 = vpack.c.b16 %v1372, %v1371
          %v1387 = vpack.c.b16 %v1374, %v1373
          %v1388 = vpack.c.b16 %v1376, %v1375
          %v1389 = vpack.c.b16 %v1378, %v1377
          %v1390 = vpack.c.b16 %v1380, %v1379
          %v1391 = vpack.c.b16 %v1382, %v1381
          %v1392 = vpack.c.b16 %v1384, %v1383
          %1401 = vmatpush.bf16.msra.mxu0 %v1392
          %1402 = vmatpush.bf16.msra.mxu0 %v1391
          %1403 = vmatpush.bf16.msra.mxu0 %v1390
          %1404 = vmatpush.bf16.msra.mxu0 %v1389
          %1405 = vmatpush.bf16.msra.mxu0 %v1388
          %1406 = vmatpush.bf16.msra.mxu0 %v1387
          %1407 = vmatpush.bf16.msra.mxu0 %v1386
          %1408 = vmatpush.bf16.msra.mxu0 %v1385
          %1409 = vmatmul.bf16.gmra.mxu0 %v1258
          %v1410 = vpop.f32.mrf.mxu0
          %v1411 = vadd.f32 %v1350, %v1410
          %v1412 = vpop.f32.mrf.mxu0
          %1413 = vdwg.mxu0
          %v1414 = vld [vmem:[%s9] sm:$0x1]
          %v1416 = vperm.slane %v1414, 0
          %v1418 = vadd.f32 %v1411, %v1416
          %1419 = vst [vmem:[#allocation2] sm:$0xff] %v1418
          %v1420 = vld [vmem:[%s12] sm:$0x1]
          %v1422 = vperm.slane %v1420, 0
          %v1424 = vmul.f32 %v688, %v1422
          %1425 = vadd.xlane.f32.xlu0 %v1424
          %v1426 = vpop.xlane.xlu0 %1425
          %v1427 = vld [vmem:[%s13] sm:$0x1]
          %v1429 = vperm.slane %v1427, 0
          %v1431 = vmul.f32 %v1255, %v1429
          %1432 = vadd.xlane.f32.xlu0 %v1431
          %v1433 = vpop.xlane.xlu0 %1432
          %v1434 = vadd.f32 %v1426, %v1433
          %v1435 = vld [vmem:[%s14] sm:$0x1]
          %v1437 = vperm.slane %v1435, 0
          %v1439 = vmul.f32 %v1253, %v1437
          %1440 = vadd.xlane.f32.xlu0 %v1439
          %v1441 = vpop.xlane.xlu0 %1440
          %v1442 = vadd.f32 %v1434, %v1441
          %v1443 = vld [vmem:[%s15] sm:$0x1]
          %v1445 = vperm.slane %v1443, 0
          %v1447 = vmul.f32 %v685, %v1445
          %1448 = vadd.xlane.f32.xlu0 %v1447
          %v1449 = vpop.xlane.xlu0 %1448
          %v1450 = vadd.f32 %v1442, %v1449
          %v1451 = vld [vmem:[#allocation8] sm:$0x1]
          %v1453 = vperm.slane %v1451, 0
          %v1455 = vadd.f32 %v1450, %v1453
          %v1456 = vxor.u32 %v1455, 2147483648
          %v1457 = vmul.f32 %v1456, 1.442695
          %v1458 = vpow.pop %v1457
          %v1459 = vadd.f32 %v1458, 1.0
          %v1460 = vrcp.pop %v1459
          %v1461 = vmul.f32 %v1459, %v1460
          %v1462 = vsub.f32 1.0, %v1461
          %v1463 = vmul.f32 %v1460, %v1462
          %v1464 = vadd.f32 %v1460, %v1463
          %vm1465 = vweird.f32 %v1459
          %vm1466 = vweird.f32 %v1460
          %vm1467 = vmor %vm1465, %vm1466
          %v1468 = vsel %vm1467, %v1460, %v1464
          %v1469 = vand.u32 2147483647, %v1459
          %vm1470 = vcmp.eq.f32.partialorder %v1469, 8.507059e+37
          %v1471 = vand.u32 %v1459, 2147483648
          %v1472 = vor.u32 1.1754944e-38, %v1471
          %v1473 = vsel %vm1470, %v1472, %v1468
          %v1474 = vmul.f32 1.0, %v1473
          %vm1475 = vcmask 7168
          %1476 = vst.msk [vmem:[#allocation5] sm:$0xff] %vm1475, %v1474
          %1477 = vst.msk [vmem:[#allocation6] sm:$0xff] %vm1475, -inf
        $region108: #{fwd.1} parent=87 // pred_fallthru
          _
        %s1478 = smul.u32 %s39, 256
        %v1479 = vld [vmem:[#allocation2] sm:$0xff]
        %v1480 = vpack.c.bf16 %v1479, %v1479
        %v1481 = vld [vmem:[%s628] sm:$0xff]
        %v1482 = vld [vmem:[%s628 + $0x8] sm:$0xff]
        %v1483 = vld [vmem:[%s628 + $0x10] sm:$0xff]
        %v1484 = vld [vmem:[%s628 + $0x18] sm:$0xff]
        %v1485 = vld [vmem:[%s628 + $0x20] sm:$0xff]
        %v1486 = vld [vmem:[%s628 + $0x28] sm:$0xff]
        %v1487 = vld [vmem:[%s628 + $0x30] sm:$0xff]
        %v1488 = vld [vmem:[%s628 + $0x38] sm:$0xff]
        %v1489 = vld [vmem:[%s628 + $0x40] sm:$0xff]
        %v1490 = vld [vmem:[%s628 + $0x48] sm:$0xff]
        %v1491 = vld [vmem:[%s628 + $0x50] sm:$0xff]
        %v1492 = vld [vmem:[%s628 + $0x58] sm:$0xff]
        %v1493 = vld [vmem:[%s628 + $0x60] sm:$0xff]
        %v1494 = vld [vmem:[%s628 + $0x68] sm:$0xff]
        %v1495 = vld [vmem:[%s628 + $0x70] sm:$0xff]
        %v1496 = vld [vmem:[%s628 + $0x78] sm:$0xff]
        %s1497 = sshra.s32 %s1478, 7
        %s1498 = sand.u32 %s1478, 127
        %s1499 = scalar_lea.vmem %s11, %s1497
        %v1500 = vld [vmem:[%s1499] sm:$0x3]
        %v1502 = vperm.slane %v1500, 0
        %v1503 = vperm.slane %v1500, 1
        %v1522 = vunpack.c.l.b16 %v1481
        %v1523 = vunpack.c.h.b16 %v1481
        %v1524 = vunpack.c.l.b16 %v1482
        %v1525 = vunpack.c.h.b16 %v1482
        %v1526 = vunpack.c.l.b16 %v1483
        %v1527 = vunpack.c.h.b16 %v1483
        %v1528 = vunpack.c.l.b16 %v1484
        %v1529 = vunpack.c.h.b16 %v1484
        %v1530 = vunpack.c.l.b16 %v1485
        %v1531 = vunpack.c.h.b16 %v1485
        %v1532 = vunpack.c.l.b16 %v1486
        %v1533 = vunpack.c.h.b16 %v1486
        %v1534 = vunpack.c.l.b16 %v1487
        %v1535 = vunpack.c.h.b16 %v1487
        %v1536 = vunpack.c.l.b16 %v1488
        %v1537 = vunpack.c.h.b16 %v1488
        %v1538 = vunpack.c.l.b16 %v1489
        %v1539 = vunpack.c.h.b16 %v1489
        %v1540 = vunpack.c.l.b16 %v1490
        %v1541 = vunpack.c.h.b16 %v1490
        %v1542 = vunpack.c.l.b16 %v1491
        %v1543 = vunpack.c.h.b16 %v1491
        %v1544 = vunpack.c.l.b16 %v1492
        %v1545 = vunpack.c.h.b16 %v1492
        %v1546 = vunpack.c.l.b16 %v1493
        %v1547 = vunpack.c.h.b16 %v1493
        %v1548 = vunpack.c.l.b16 %v1494
        %v1549 = vunpack.c.h.b16 %v1494
        %v1550 = vunpack.c.l.b16 %v1495
        %v1551 = vunpack.c.h.b16 %v1495
        %v1552 = vunpack.c.l.b16 %v1496
        %v1553 = vunpack.c.h.b16 %v1496
        %v1554 = vpack.c.b16 %v1524, %v1522
        %v1555 = vpack.c.b16 %v1525, %v1523
        %v1556 = vpack.c.b16 %v1528, %v1526
        %v1557 = vpack.c.b16 %v1529, %v1527
        %v1558 = vpack.c.b16 %v1532, %v1530
        %v1559 = vpack.c.b16 %v1533, %v1531
        %v1560 = vpack.c.b16 %v1536, %v1534
        %v1561 = vpack.c.b16 %v1537, %v1535
        %v1562 = vpack.c.b16 %v1540, %v1538
        %v1563 = vpack.c.b16 %v1541, %v1539
        %v1564 = vpack.c.b16 %v1544, %v1542
        %v1565 = vpack.c.b16 %v1545, %v1543
        %v1566 = vpack.c.b16 %v1548, %v1546
        %v1567 = vpack.c.b16 %v1549, %v1547
        %v1568 = vpack.c.b16 %v1552, %v1550
        %v1569 = vpack.c.b16 %v1553, %v1551
        %1586 = vmatpush.bf16.msra.mxu0 %v1568
        %1587 = vmatpush.bf16.msra.mxu0 %v1566
        %1588 = vmatpush.bf16.msra.mxu0 %v1564
        %1589 = vmatpush.bf16.msra.mxu0 %v1562
        %1590 = vmatpush.bf16.msra.mxu0 %v1560
        %1591 = vmatpush.bf16.msra.mxu0 %v1558
        %1592 = vmatpush.bf16.msra.mxu0 %v1556
        %1593 = vmatpush.bf16.msra.mxu0 %v1554
        %1594 = vmatmul.bf16.gmra.mxu0 %v1480
        %v1595 = vpop.f32.mrf.mxu0
        %v1596 = vadd.f32 %v1502, %v1595
        %v1597 = vpop.f32.mrf.mxu0
        %1598 = vdwg.mxu0
        %1599 = vmatpush.bf16.msra.mxu0 %v1569
        %1600 = vmatpush.bf16.msra.mxu0 %v1567
        %1601 = vmatpush.bf16.msra.mxu0 %v1565
        %1602 = vmatpush.bf16.msra.mxu0 %v1563
        %1603 = vmatpush.bf16.msra.mxu0 %v1561
        %1604 = vmatpush.bf16.msra.mxu0 %v1559
        %1605 = vmatpush.bf16.msra.mxu0 %v1557
        %1606 = vmatpush.bf16.msra.mxu0 %v1555
        %1607 = vmatmul.bf16.gmra.mxu0 %v1480
        %v1608 = vpop.f32.mrf.mxu0
        %v1609 = vadd.f32 %v1503, %v1608
        %v1610 = vpop.f32.mrf.mxu0
        %1611 = vdwg.mxu0
        %s1612 = smul.addr %s1497, 8
        %s1613 = scalar_lea.vmem [#allocation7], %s1612
        %1614 = vst [vmem:[%s1613] sm:$0xff] %v1596
        %1615 = vst [vmem:[%s1613 + $0x8] sm:$0xff] %v1609
        %v1616 = vld [vmem:[#allocation6] sm:$0xff]
        %v1617 = vmax.f32 %v1596, %v1609
        %1618 = vmax.xlane.f32.xlu0 %v1617
        %v1619 = vpop.xlane.xlu0 %1618
        %v1620 = vmax.f32 %v1616, %v1619
        %vm1621 = vcmask 7168
        %1622 = vst.msk [vmem:[#allocation6] sm:$0xff] %vm1621, %v1620
        %p1623 = scmp.eq.s32.totalorder %s39, 3
        // Predicated region
        $region109: #{fwd.1} parent=87 // pred_check
          %p1624 = pneg %p1623
        $region110: #{fwd.1} parent=87 // pred_check_branch
          %1626 = sbr.rel (%p1624) target = $region112
        $region111: #{fwd.1} parent=87 // pred_region
          %v1627 = vld [vmem:[#allocation7] sm:$0xff]
          %v1628 = vld [vmem:[#allocation7 + $0x8] sm:$0xff]
          %v1629 = vld [vmem:[#allocation7 + $0x10] sm:$0xff]
          %v1630 = vld [vmem:[#allocation7 + $0x18] sm:$0xff]
          %v1631 = vld [vmem:[#allocation7 + $0x20] sm:$0xff]
          %v1632 = vld [vmem:[#allocation7 + $0x28] sm:$0xff]
          %v1633 = vld [vmem:[#allocation7 + $0x30] sm:$0xff]
          %v1634 = vld [vmem:[#allocation7 + $0x38] sm:$0xff]
          %v1635 = vld [vmem:[#allocation6] sm:$0xff]
          %1637 = vset.pattern.permute.xlu0 0
          %1638 = vperm.xlu0 %1637, %v1635
          %v1639 = vpop.permute.xlu0 %1638
          %v1641 = vsub.f32 %v1627, %v1639
          %v1642 = vsub.f32 %v1628, %v1639
          %v1643 = vsub.f32 %v1629, %v1639
          %v1644 = vsub.f32 %v1630, %v1639
          %v1645 = vsub.f32 %v1631, %v1639
          %v1646 = vsub.f32 %v1632, %v1639
          %v1647 = vsub.f32 %v1633, %v1639
          %v1648 = vsub.f32 %v1634, %v1639
          %v1649 = vmul.f32 %v1641, 1.442695
          %v1650 = vpow.pop %v1649
          %v1651 = vmul.f32 %v1642, 1.442695
          %v1652 = vpow.pop %v1651
          %v1653 = vmul.f32 %v1643, 1.442695
          %v1654 = vpow.pop %v1653
          %v1655 = vmul.f32 %v1644, 1.442695
          %v1656 = vpow.pop %v1655
          %v1657 = vmul.f32 %v1645, 1.442695
          %v1658 = vpow.pop %v1657
          %v1659 = vmul.f32 %v1646, 1.442695
          %v1660 = vpow.pop %v1659
          %v1661 = vmul.f32 %v1647, 1.442695
          %v1662 = vpow.pop %v1661
          %v1663 = vmul.f32 %v1648, 1.442695
          %v1664 = vpow.pop %v1663
          %v1665 = vadd.f32 %v1650, %v1652
          %v1666 = vadd.f32 %v1665, %v1654
          %v1667 = vadd.f32 %v1666, %v1656
          %v1668 = vadd.f32 %v1667, %v1658
          %v1669 = vadd.f32 %v1668, %v1660
          %v1670 = vadd.f32 %v1669, %v1662
          %v1671 = vadd.f32 %v1670, %v1664
          %1672 = vadd.xlane.f32.xlu0 %v1671
          %v1673 = vpop.xlane.xlu0 %1672
          %v1674 = vrcp.pop %v1673
          %v1675 = vmul.f32 %v1673, %v1674
          %v1676 = vsub.f32 1.0, %v1675
          %v1677 = vmul.f32 %v1674, %v1676
          %v1678 = vadd.f32 %v1674, %v1677
          %vm1679 = vweird.f32 %v1673
          %vm1680 = vweird.f32 %v1674
          %vm1681 = vmor %vm1679, %vm1680
          %v1682 = vsel %vm1681, %v1674, %v1678
          %v1683 = vand.u32 2147483647, %v1673
          %vm1684 = vcmp.eq.f32.partialorder %v1683, 8.507059e+37
          %v1685 = vand.u32 %v1673, 2147483648
          %v1686 = vor.u32 1.1754944e-38, %v1685
          %v1687 = vsel %vm1684, %v1686, %v1682
          %v1688 = vmul.f32 1.0, %v1687
          %v1689 = vmul.f32 %v1650, %v1688
          %v1690 = vmul.f32 %v1652, %v1688
          %v1691 = vmul.f32 %v1654, %v1688
          %v1692 = vmul.f32 %v1656, %v1688
          %v1693 = vmul.f32 %v1658, %v1688
          %v1694 = vmul.f32 %v1660, %v1688
          %v1695 = vmul.f32 %v1662, %v1688
          %v1696 = vmul.f32 %v1664, %v1688
          %1697 = vst [vmem:[%s17] sm:$0xff] %v1689
          %1698 = vst [vmem:[%s17 + $0x8] sm:$0xff] %v1690
          %1699 = vst [vmem:[%s17 + $0x10] sm:$0xff] %v1691
          %1700 = vst [vmem:[%s17 + $0x18] sm:$0xff] %v1692
          %1701 = vst [vmem:[%s17 + $0x20] sm:$0xff] %v1693
          %1702 = vst [vmem:[%s17 + $0x28] sm:$0xff] %v1694
          %1703 = vst [vmem:[%s17 + $0x30] sm:$0xff] %v1695
          %1704 = vst [vmem:[%s17 + $0x38] sm:$0xff] %v1696
          %v1705 = vld [vmem:[#allocation3] sm:$0xff]
          %1706 = vst [vmem:[%s18] sm:$0xff] %v1705
          %v1707 = vld [vmem:[#allocation4] sm:$0xff]
          %1708 = vst [vmem:[%s19] sm:$0xff] %v1707
          %v1709 = vld [vmem:[#allocation5] sm:$0xff]
          %1710 = vst.msk [vmem:[%s20] sm:$0xff] %vm1621, %v1709
        $region112: #{fwd.1} parent=87 // pred_fallthru
          _
        // Predicated region
        $region113: #{fwd.1} parent=87 // pred_check
          %p1711 = pneg %p414
        $region114: #{fwd.1} parent=87 // pred_check_branch
          %1713 = sbr.rel (%p1711) target = $region116
        $region115: #{fwd.1} parent=87 // pred_region
          _
        $region116: #{fwd.1} parent=87 // pred_fallthru
          _
        // Predicated region
        $region117: #{fwd.1} parent=87 // pred_check
          %p1714 = pneg %p435
        $region118: #{fwd.1} parent=87 // pred_check_branch
          %1716 = sbr.rel (%p1714) target = $region120
        $region119: #{fwd.1} parent=87 // pred_region
          _
        $region120: #{fwd.1} parent=87 // pred_fallthru
          _
        // Predicated region
        $region121: #{fwd.1} parent=87 // pred_check
          %p1717 = pneg %p456
        $region122: #{fwd.1} parent=87 // pred_check_branch
          %1719 = sbr.rel (%p1717) target = $region124
        $region123: #{fwd.1} parent=87 // pred_region
          _
        $region124: #{fwd.1} parent=87 // pred_fallthru
          _
        // Predicated region
        $region125: #{fwd.1} parent=87 // pred_check
          %p1720 = pneg %p477
        $region126: #{fwd.1} parent=87 // pred_check_branch
          %1722 = sbr.rel (%p1720) target = $region128
        $region127: #{fwd.1} parent=87 // pred_region
          _
        $region128: #{fwd.1} parent=87 // pred_fallthru
          _
        // Predicated region
        $region129: #{fwd.1} parent=87 // pred_check
          %p1723 = pneg %p414
        $region130: #{fwd.1} parent=87 // pred_check_branch
          %1725 = sbr.rel (%p1723) target = $region132
        $region131: #{fwd.1} parent=87 // pred_region
          _
        $region132: #{fwd.1} parent=87 // pred_fallthru
          _
        // Predicated region
        $region133: #{fwd.1} parent=87 // pred_check
          %p1726 = pneg %p435
        $region134: #{fwd.1} parent=87 // pred_check_branch
          %1728 = sbr.rel (%p1726) target = $region136
        $region135: #{fwd.1} parent=87 // pred_region
          _
        $region136: #{fwd.1} parent=87 // pred_fallthru
          _
        // Predicated region
        $region137: #{fwd.1} parent=87 // pred_check
          %p1729 = pneg %p456
        $region138: #{fwd.1} parent=87 // pred_check_branch
          %1731 = sbr.rel (%p1729) target = $region140
        $region139: #{fwd.1} parent=87 // pred_region
          _
        $region140: #{fwd.1} parent=87 // pred_fallthru
          _
        // Predicated region
        $region141: #{fwd.1} parent=87 // pred_check
          %p1732 = pneg %p477
        $region142: #{fwd.1} parent=87 // pred_check_branch
          %1734 = sbr.rel (%p1732) target = $region144
        $region143: #{fwd.1} parent=87 // pred_region
          _
        $region144: #{fwd.1} parent=87 // pred_fallthru
          _
      $region88: #{fwd.1} parent=5 // pred_fallthru
        _
      %p1735 = scmp.le.s32.totalorder 2, %s34
      // Predicated region
      $region145: #{fwd.1} parent=5 // pred_check
        %p1736 = pneg %p1735
      $region146: #{fwd.1} parent=5 // pred_check_branch
        %1738 = sbr.rel (%p1736) target = $region148
      $region147: #{fwd.1} parent=5 // pred_region
        %s1739 = ssub.s32 %s34, 2
      $region148: #{fwd.1} parent=5 // pred_fallthru
        _
    $region6: #{fwd.1} parent=1 // loop_footer
      %s38 = sadd.s32 1, %s34
    $region7: #{fwd.1} parent=1 // loop_footer_branch
      %33 = sbr.rel target = $region3
    $region8: #{fwd.1} parent=1 // loop_exit
      _
    %1740 = vsyncpa [#allocation10], 1
    %s1741 = scalar_lea.sflag [#allocation10], 1
    %1742 = vsyncpa %s1741, 1
    %1743 = vsyncpa [#allocation12], 1
    %1744 = vsyncpa [#allocation15], 1
    %s1745 = scalar_lea.sflag [#allocation15], 1
    %1746 = vsyncpa %s1745, 1

</llo_original>
